<compile_context>
chip_gen: v5e
topology: v5e:2x2
jax: 0.10.0
libtpu: 0.0.40
codegen_flags: <defaults>
</compile_context>

<pallas_src>
import functools
import math

import jax
import jax.numpy as jnp
from jax.experimental import pallas as pl
from jax.experimental.pallas import tpu as pltpu


# ----------------------------------------------------------------------------
# Kernel: fused scaled-dot-product attention with online softmax
# ----------------------------------------------------------------------------
def _attention_kernel(q_ref, k_ref, v_ref, o_ref, m_sc, l_sc, acc_sc, *, sm_scale):
    # q_ref: (1, tq, D), k_ref/v_ref: (1, tk, D/Dv), o_ref: (1, tq, Dv)
    ki = pl.program_id(2)

    @pl.when(ki == 0)
    def _init():
        m_sc[...] = jnp.full_like(m_sc, -jnp.inf)
        l_sc[...] = jnp.zeros_like(l_sc)
        acc_sc[...] = jnp.zeros_like(acc_sc)

    q = q_ref[0]          # (tq, D)
    k = k_ref[0]          # (tk, D)
    v = v_ref[0]          # (tk, Dv)

    # scores: (tq, tk) = q @ k^T / sqrt(d_k), accumulated in f32 on the MXU
    s = jax.lax.dot_general(
        q, k, (((1,), (1,)), ((), ())),
        preferred_element_type=jnp.float32) * sm_scale

    # online (streaming) softmax update
    m_prev = m_sc[...]                                        # (tq, 1)
    m_new = jnp.maximum(m_prev, jnp.max(s, axis=-1, keepdims=True))
    alpha = jnp.exp(m_prev - m_new)                           # rescale factor
    p = jnp.exp(s - m_new)                                    # (tq, tk)

    l_sc[...] = alpha * l_sc[...] + jnp.sum(p, axis=-1, keepdims=True)
    acc_sc[...] = alpha * acc_sc[...] + jnp.dot(
        p.astype(v.dtype), v, preferred_element_type=jnp.float32)
    m_sc[...] = m_new

    @pl.when(ki == pl.num_programs(2) - 1)
    def _finalize():
        o_ref[0] = (acc_sc[...] / l_sc[...]).astype(o_ref.dtype)


# ----------------------------------------------------------------------------
# Wrapper
# ----------------------------------------------------------------------------
def _pick_tile(n: int) -> int:
    """Largest 128-multiple tile that divides n, else the full extent."""
    for t in (1024, 512, 256, 128):
        if n % t == 0:
            return t
    return n  # full extent: block dim == array dim is always legal


def attention(q, k, v, d_k):
    """softmax(q @ k^T / sqrt(d_k)) @ v, matching the PyTorch AttentionBlock."""
    *lead, Sq, D = q.shape
    Sk = k.shape[-2]
    Dv = v.shape[-1]
    assert k.shape[-1] == D and v.shape[-2] == Sk

    bh = 1
    for s in lead:
        bh *= s
    qf = q.reshape(bh, Sq, D)
    kf = k.reshape(bh, Sk, D)
    vf = v.reshape(bh, Sk, Dv)

    tq = _pick_tile(Sq)
    tk = _pick_tile(Sk)
    grid = (bh, Sq // tq, Sk // tk)
    sm_scale = 1.0 / math.sqrt(d_k)

    kernel = functools.partial(_attention_kernel, sm_scale=sm_scale)

    out = pl.pallas_call(
        kernel,
        out_shape=jax.ShapeDtypeStruct((bh, Sq, Dv), q.dtype),
        grid_spec=pltpu.PrefetchScalarGridSpec(
            num_scalar_prefetch=0,
            grid=grid,
            in_specs=[
                pl.BlockSpec((1, tq, D), lambda b, qi, ki: (b, qi, 0)),
                pl.BlockSpec((1, tk, D), lambda b, qi, ki: (b, ki, 0)),
                pl.BlockSpec((1, tk, Dv), lambda b, qi, ki: (b, ki, 0)),
            ],
            out_specs=pl.BlockSpec((1, tq, Dv), lambda b, qi, ki: (b, qi, 0)),
            scratch_shapes=[
                pltpu.VMEM((tq, 1), jnp.float32),    # running max  m
                pltpu.VMEM((tq, 1), jnp.float32),    # running sum  l
                pltpu.VMEM((tq, Dv), jnp.float32),   # output accumulator
            ],
        ),
        compiler_params=pltpu.CompilerParams(
            dimension_semantics=("parallel", "parallel", "arbitrary"),
            vmem_limit_bytes=32 * 1024 * 1024,
        ),
    )(qf, kf, vf)
    return out.reshape(*lead, Sq, Dv)


# ----------------------------------------------------------------------------
# Self-test
# ----------------------------------------------------------------------------
if __name__ == "__main__":
    key = jax.random.PRNGKey(0)
    kq, kk, kv = jax.random.split(key, 3)

    B, H, S, D = 2, 4, 128, 128      # lane-dense D; tq = tk = 128 -> grid (8,1,1)
    d_k = D
    q = jax.random.normal(kq, (B, H, S, D), jnp.float32)
    k = jax.random.normal(kk, (B, H, S, D), jnp.float32)
    v = jax.random.normal(kv, (B, H, S, D), jnp.float32)

    out = attention(q, k, v, d_k)
    out = jax.block_until_ready(out)

    # pure-JAX reference (full-precision matmuls)
    ref = jnp.einsum("bhqd,bhkd->bhqk", q, k,
                     precision=jax.lax.Precision.HIGHEST) / math.sqrt(d_k)
    ref = jax.nn.softmax(ref, axis=-1)
    ref = jnp.einsum("bhqk,bhkd->bhqd", ref, v,
                     precision=jax.lax.Precision.HIGHEST)

    assert out.shape == ref.shape, (out.shape, ref.shape)
    assert bool(jnp.all(jnp.isfinite(out)))
    max_err = float(jnp.max(jnp.abs(out - ref)))
    assert max_err < 1e-3, max_err
    print("KERNEL_OK")
</pallas_src>

<mosaic_0001>
module attributes {stable_mosaic.version = 11 : i64} {
  func.func @_attention_kernel(%arg0: i32, %arg1: i32, %arg2: i32, %arg3: memref<1x128x128xf32, #tpu.memory_space<vmem>>, %arg4: memref<1x128x128xf32, #tpu.memory_space<vmem>>, %arg5: memref<1x128x128xf32, #tpu.memory_space<vmem>>, %arg6: memref<1x128x128xf32, #tpu.memory_space<vmem>>, %arg7: memref<128x1xf32, #tpu.memory_space<vmem>>, %arg8: memref<128x1xf32, #tpu.memory_space<vmem>>, %arg9: memref<128x128xf32, #tpu.memory_space<vmem>>) attributes {dimension_semantics = [#tpu.dimension_semantics<parallel>, #tpu.dimension_semantics<parallel>, #tpu.dimension_semantics<arbitrary>], iteration_bounds = array<i64: 8, 1, 1>, scalar_prefetch = 0 : i64, scratch_operands = 3 : i64, tpu.core_type = #tpu.core_type<tc>, window_params = [{transform_indices = @transform_0, window_bounds = array<i64: 1, 128, 128>}, {transform_indices = @transform_1, window_bounds = array<i64: 1, 128, 128>}, {transform_indices = @transform_2, window_bounds = array<i64: 1, 128, 128>}, {transform_indices = @transform_3, window_bounds = array<i64: 1, 128, 128>}]} {
    %c0_i32 = arith.constant 0 : i32
    %0 = arith.cmpi eq, %arg2, %c0_i32 : i32
    %1 = arith.extui %0 : i1 to i32
    %c0_i32_0 = arith.constant 0 : i32
    %2 = arith.cmpi ne, %1, %c0_i32_0 : i32
    scf.if %2 {
      %cst_27 = arith.constant 0xFF800000 : f32
      %37 = vector.broadcast %cst_27 : f32 to vector<128x1xf32>
      %c0_28 = arith.constant 0 : index
      %c0_29 = arith.constant 0 : index
      %38 = vector.load %arg7[%c0_28, %c0_29] : memref<128x1xf32, #tpu.memory_space<vmem>>, vector<128x1xf32>
      tpu.vector_store %arg7[%c0_28, %c0_29], %37 {strides = array<i32>} : memref<128x1xf32, #tpu.memory_space<vmem>>, vector<128x1xf32>,
      %cst_30 = arith.constant 0.000000e+00 : f32
      %39 = vector.broadcast %cst_30 : f32 to vector<128x1xf32>
      %c0_31 = arith.constant 0 : index
      %c0_32 = arith.constant 0 : index
      %40 = vector.load %arg8[%c0_31, %c0_32] : memref<128x1xf32, #tpu.memory_space<vmem>>, vector<128x1xf32>
      tpu.vector_store %arg8[%c0_31, %c0_32], %39 {strides = array<i32>} : memref<128x1xf32, #tpu.memory_space<vmem>>, vector<128x1xf32>,
      %cst_33 = arith.constant 0.000000e+00 : f32
      %41 = vector.broadcast %cst_33 : f32 to vector<128x128xf32>
      %c0_34 = arith.constant 0 : index
      %c0_35 = arith.constant 0 : index
      %42 = vector.load %arg9[%c0_34, %c0_35] : memref<128x128xf32, #tpu.memory_space<vmem>>, vector<128x128xf32>
      tpu.vector_store %arg9[%c0_34, %c0_35], %41 {strides = array<i32>} : memref<128x128xf32, #tpu.memory_space<vmem>>, vector<128x128xf32>,
    } else {
    }
    %c0 = arith.constant 0 : index
    %c0_1 = arith.constant 0 : index
    %c0_2 = arith.constant 0 : index
    %3 = vector.load %arg3[%c0, %c0_1, %c0_2] : memref<1x128x128xf32, #tpu.memory_space<vmem>>, vector<1x128x128xf32>
    %4 = vector.shape_cast %3 : vector<1x128x128xf32> to vector<128x128xf32>
    %c0_3 = arith.constant 0 : index
    %c0_4 = arith.constant 0 : index
    %c0_5 = arith.constant 0 : index
    %5 = vector.load %arg4[%c0_3, %c0_4, %c0_5] : memref<1x128x128xf32, #tpu.memory_space<vmem>>, vector<1x128x128xf32>
    %6 = vector.shape_cast %5 : vector<1x128x128xf32> to vector<128x128xf32>
    %c0_6 = arith.constant 0 : index
    %c0_7 = arith.constant 0 : index
    %c0_8 = arith.constant 0 : index
    %7 = vector.load %arg5[%c0_6, %c0_7, %c0_8] : memref<1x128x128xf32, #tpu.memory_space<vmem>>, vector<1x128x128xf32>
    %8 = vector.shape_cast %7 : vector<1x128x128xf32> to vector<128x128xf32>
    %cst = arith.constant dense<0.000000e+00> : vector<128x128xf32>
    %9 = tpu.matmul %4, %6, %cst {dimension_numbers = #tpu.dot_dimension_numbers<[1], [1], [0], [0], [0, 0, 1, 0], [], []>} : vector<128x128xf32>, vector<128x128xf32>, vector<128x128xf32> -> vector<128x128xf32>
    %cst_9 = arith.constant 0.0883883461 : f32
    %10 = vector.broadcast %cst_9 : f32 to vector<128x128xf32>
    %11 = arith.mulf %9, %10 : vector<128x128xf32>
    %c0_10 = arith.constant 0 : index
    %c0_11 = arith.constant 0 : index
    %12 = vector.load %arg7[%c0_10, %c0_11] : memref<128x1xf32, #tpu.memory_space<vmem>>, vector<128x1xf32>
    %cst_12 = arith.constant dense<0xFF800000> : vector<128xf32>
    %13 = vector.multi_reduction <maximumf>, %11, %cst_12 [1] : vector<128x128xf32> to vector<128xf32>
    %14 = vector.shape_cast %13 : vector<128xf32> to vector<128x1xf32>
    %15 = arith.maximumf %12, %14 : vector<128x1xf32>
    %16 = arith.subf %12, %15 : vector<128x1xf32>
    %17 = math.exp %16 : vector<128x1xf32>
    %18 = vector.broadcast %15 : vector<128x1xf32> to vector<128x128xf32>
    %19 = arith.subf %11, %18 : vector<128x128xf32>
    %20 = math.exp %19 : vector<128x128xf32>
    %c0_13 = arith.constant 0 : index
    %c0_14 = arith.constant 0 : index
    %21 = vector.load %arg8[%c0_13, %c0_14] : memref<128x1xf32, #tpu.memory_space<vmem>>, vector<128x1xf32>
    %22 = arith.mulf %17, %21 : vector<128x1xf32>
    %cst_15 = arith.constant dense<0.000000e+00> : vector<128xf32>
    %23 = vector.multi_reduction <add>, %20, %cst_15 [1] : vector<128x128xf32> to vector<128xf32>
    %24 = vector.shape_cast %23 : vector<128xf32> to vector<128x1xf32>
    %25 = arith.addf %22, %24 : vector<128x1xf32>
    %c0_16 = arith.constant 0 : index
    %c0_17 = arith.constant 0 : index
    %26 = vector.load %arg8[%c0_16, %c0_17] : memref<128x1xf32, #tpu.memory_space<vmem>>, vector<128x1xf32>
    tpu.vector_store %arg8[%c0_16, %c0_17], %25 {strides = array<i32>} : memref<128x1xf32, #tpu.memory_space<vmem>>, vector<128x1xf32>,
    %c0_18 = arith.constant 0 : index
    %c0_19 = arith.constant 0 : index
    %27 = vector.load %arg9[%c0_18, %c0_19] : memref<128x128xf32, #tpu.memory_space<vmem>>, vector<128x128xf32>
    %28 = vector.broadcast %17 : vector<128x1xf32> to vector<128x128xf32>
    %29 = arith.mulf %28, %27 : vector<128x128xf32>
    %cst_20 = arith.constant dense<0.000000e+00> : vector<128x128xf32>
    %30 = tpu.matmul %20, %8, %cst_20 {dimension_numbers = #tpu.dot_dimension_numbers<[1], [0], [0], [1], [0, 0, 1, 1], [], []>} : vector<128x128xf32>, vector<128x128xf32>, vector<128x128xf32> -> vector<128x128xf32>
    %31 = arith.addf %29, %30 : vector<128x128xf32>
    %c0_21 = arith.constant 0 : index
    %c0_22 = arith.constant 0 : index
    %32 = vector.load %arg9[%c0_21, %c0_22] : memref<128x128xf32, #tpu.memory_space<vmem>>, vector<128x128xf32>
    tpu.vector_store %arg9[%c0_21, %c0_22], %31 {strides = array<i32>} : memref<128x128xf32, #tpu.memory_space<vmem>>, vector<128x128xf32>,
    %c0_23 = arith.constant 0 : index
    %c0_24 = arith.constant 0 : index
    %33 = vector.load %arg7[%c0_23, %c0_24] : memref<128x1xf32, #tpu.memory_space<vmem>>, vector<128x1xf32>
    tpu.vector_store %arg7[%c0_23, %c0_24], %15 {strides = array<i32>} : memref<128x1xf32, #tpu.memory_space<vmem>>, vector<128x1xf32>,
    %c0_i32_25 = arith.constant 0 : i32
    %34 = arith.cmpi eq, %arg2, %c0_i32_25 : i32
    %35 = arith.extui %34 : i1 to i32
    %c0_i32_26 = arith.constant 0 : i32
    %36 = arith.cmpi ne, %35, %c0_i32_26 : i32
    scf.if %36 {
      %c0_27 = arith.constant 0 : index
      %c0_28 = arith.constant 0 : index
      %37 = vector.load %arg9[%c0_27, %c0_28] : memref<128x128xf32, #tpu.memory_space<vmem>>, vector<128x128xf32>
      %c0_29 = arith.constant 0 : index
      %c0_30 = arith.constant 0 : index
      %38 = vector.load %arg8[%c0_29, %c0_30] : memref<128x1xf32, #tpu.memory_space<vmem>>, vector<128x1xf32>
      %39 = vector.broadcast %38 : vector<128x1xf32> to vector<128x128xf32>
      %40 = arith.divf %37, %39 : vector<128x128xf32>
      %c0_31 = arith.constant 0 : index
      %c0_32 = arith.constant 0 : index
      %c0_33 = arith.constant 0 : index
      %41 = vector.load %arg6[%c0_31, %c0_32, %c0_33] : memref<1x128x128xf32, #tpu.memory_space<vmem>>, vector<1x128x128xf32>
      %42 = vector.shape_cast %41 : vector<1x128x128xf32> to vector<128x128xf32>
      %43 = vector.shape_cast %40 : vector<128x128xf32> to vector<1x128x128xf32>
      tpu.vector_store %arg6[%c0_31, %c0_32, %c0_33], %43 {strides = array<i32>} : memref<1x128x128xf32, #tpu.memory_space<vmem>>, vector<1x128x128xf32>,
    } else {
    }
    return
  }
  func.func @transform_0(%arg0: i32, %arg1: i32, %arg2: i32) -> (i32, i32, i32) {
    %c0_i32 = arith.constant 0 : i32
    %c0_i32_0 = arith.constant 0 : i32
    return %arg0, %arg1, %c0_i32 : i32, i32, i32
  }
  func.func @transform_1(%arg0: i32, %arg1: i32, %arg2: i32) -> (i32, i32, i32) {
    %c0_i32 = arith.constant 0 : i32
    %c0_i32_0 = arith.constant 0 : i32
    return %arg0, %arg2, %c0_i32 : i32, i32, i32
  }
  func.func @transform_2(%arg0: i32, %arg1: i32, %arg2: i32) -> (i32, i32, i32) {
    %c0_i32 = arith.constant 0 : i32
    %c0_i32_0 = arith.constant 0 : i32
    return %arg0, %arg2, %c0_i32 : i32, i32, i32
  }
  func.func @transform_3(%arg0: i32, %arg1: i32, %arg2: i32) -> (i32, i32, i32) {
    %c0_i32 = arith.constant 0 : i32
    %c0_i32_0 = arith.constant 0 : i32
    return %arg0, %arg1, %c0_i32 : i32, i32, i32
  }
}

</mosaic_0001>

<llo_original>
// kernel: tpu_custom_call.1
$region0: #{tpu_custom_call.1}
  #allocation0 [shape = 'u32[]', space=smem, size = 0x4, offset = 0x4, fixed_abs, tag = 'smem constant byte address 0x4 - core index']
  #allocation1 [shape = 'u32[72,128]{1,0:T(1,128)}', space=vmem, size = 0x9000, scoped, tag = 'internal scratch']
  #allocation2 [shape = 'f32[128,1]{1,0:T(8,128)}', space=vmem, size = 0x10000, scoped, tag = 'scratch operand']
  #allocation3 [shape = 'f32[128,1]{1,0:T(8,128)}', space=vmem, size = 0x10000, scoped, tag = 'scratch operand']
  #allocation4 [shape = 'f32[128,128]{1,0:T(8,128)}', space=vmem, size = 0x10000, scoped, tag = 'scratch operand']
  %s0 = inlined_call_operand.hbm [shape: f32[8,128,128], index: 0, kind: input, shape index: {}]
  %s1 = inlined_call_operand.hbm [shape: f32[8,128,128], index: 1, kind: input, shape index: {}]
  %s2 = inlined_call_operand.hbm [shape: f32[8,128,128], index: 2, kind: input, shape index: {}]
  %s3 = inlined_call_operand.hbm [shape: f32[8,128,128], index: 3, kind: output, shape index: {}]
  %s4 = sld [smem:[#allocation0]]
  $region65: #{tpu_custom_call.1} parent=0
    _
  %s6 = ssub.s32 1, %s4
  %s7 = scalar_select 0, %s6, %s4
  $region1: #{tpu_custom_call.1} parent=0
    #allocation5 [shape = 'u8[131072]{0}', space=vmem, size = 0x20000, scoped, tag = 'input window, operand 0']
    #allocation6 [shape = 's32[2]{0}', space=sflag, size = 0x8, scoped, tag = 'scoped memory for tpu_custom_call.1']
    #allocation7 [shape = 's32[2]{0}', space=sflag, size = 0x8, scoped, tag = 'scoped memory for tpu_custom_call.1']
    #allocation8 [shape = 'u8[131072]{0}', space=vmem, size = 0x20000, scoped, tag = 'input window, operand 1']
    #allocation9 [shape = 's32[2]{0}', space=sflag, size = 0x8, scoped, tag = 'scoped memory for tpu_custom_call.1']
    #allocation10 [shape = 'u8[131072]{0}', space=vmem, size = 0x20000, scoped, tag = 'input window, operand 2']
    #allocation11 [shape = 'u8[131072]{0}', space=vmem, size = 0x20000, scoped, tag = 'output window, operand 0']
    %8 = vsyncpa [#allocation6], 0
    %s9 = scalar_lea.sflag [#allocation6], 1
    %10 = vsyncpa %s9, 0
    %11 = vsyncpa [#allocation9], 0
    %s12 = scalar_lea.sflag [#allocation9], 1
    %13 = vsyncpa %s12, 0
    %14 = vsyncpa [#allocation7], 0
    %s15 = scalar_lea.sflag [#allocation7], 1
    %16 = vsyncpa %s15, 0
    loop: start=0, step=1, limit=10
    $region2: #{tpu_custom_call.1} parent=1 // loop_pre_header
      _
    $region3: #{tpu_custom_call.1} parent=1 // loop_header
      %s18 = sphi 0, %s22
      %p19 = scmp.ge.s32.totalorder %s18, 10
      %s25 = sphi 0, %s44
      %s26 = sphi 0, %s40
      %s27 = sphi 0, %s36
      %s28 = sphi 0, %s25
      %s29 = sphi 0, %s26
      %s30 = sphi 0, %s27
      %s31 = sphi 0, %s28
      %s32 = sphi 0, %s29
      %s33 = sphi 0, %s30
      %s49 = sphi 0, %s51
      %s52 = sphi 0, %s49
      %s53 = sphi 0, %s52
      %s69 = sphi 0, %s53
      %s77 = sphi 0, %s79
      %s80 = sphi 0, %s77
      %s81 = sphi 0, %s80
      %s97 = sphi 0, %s81
      %s105 = sphi 0, %s107
      %s108 = sphi 0, %s105
      %s109 = sphi 0, %s108
      %s125 = sphi 0, %s109
      %s133 = sphi 0, %s135
      %s136 = sphi 0, %s133
      %s137 = sphi 0, %s136
      %s153 = sphi 0, %s137
    $region4: #{tpu_custom_call.1} parent=1 // loop_header_branch
      %21 = sbr.rel (%p19) target = $region8
    $region5: #{tpu_custom_call.1} parent=1 // loop_body
      %s23 = ssub.s32 %s18, 1
      %s24 = ssub.s32 %s18, 2
      %s34 = sadd.s32 1, %s27
      %p35 = scmp.ge.s32.totalorder %s34, 1
      %s36 = scalar_select %p35, 0, %s34
      %s37 = sadd.s32 1, %s26
      %s38 = scalar_select %p35, %s37, %s26
      %p39 = scmp.ge.s32.totalorder %s38, 1
      %s40 = scalar_select %p39, 0, %s38
      %s41 = sadd.s32 1, %s25
      %s42 = scalar_select %p39, %s41, %s25
      %p43 = scmp.ge.s32.totalorder %s42, 8
      %s44 = scalar_select %p43, 0, %s42
      %s45 = ssub.s32 %s25, %s44
      %s46 = ssub.s32 %s26, %s40
      %s47 = sor.u32 %s45, %s46
      %p48 = scmp.eq.s32.totalorder %s47, 0
      %s50 = sadd.s32 %s49, 1
      %s51 = scalar_select %p48, %s49, %s50
      %p54 = pneg %p48
      %p55 = scmp.eq.s32.totalorder %s18, 7
      %p56 = por %p54, %p55
      %p57 = scmp.ne.s32.totalorder %s49, %s52
      %p58 = scmp.eq.s32.totalorder %s18, 0
      %p59 = por %p57, %p58
      %p60 = scmp.ne.s32.totalorder %s49, %s52
      %p61 = scmp.eq.s32.totalorder %s23, 7
      %p62 = por %p60, %p61
      %p63 = scmp.ne.s32.totalorder %s52, %s53
      %p64 = scmp.eq.s32.totalorder %s23, 0
      %p65 = por %p63, %p64
      %p66 = scmp.ne.s32.totalorder %s52, %s53
      %p67 = scmp.eq.s32.totalorder %s24, 7
      %p68 = por %p66, %p67
      %p70 = scmp.ne.s32.totalorder %s53, %s69
      %p71 = scmp.eq.s32.totalorder %s24, 0
      %p72 = por %p70, %p71
      %s73 = ssub.s32 %s25, %s44
      %s74 = ssub.s32 %s27, %s36
      %s75 = sor.u32 %s73, %s74
      %p76 = scmp.eq.s32.totalorder %s75, 0
      %s78 = sadd.s32 %s77, 1
      %s79 = scalar_select %p76, %s77, %s78
      %p82 = pneg %p76
      %p83 = scmp.eq.s32.totalorder %s18, 7
      %p84 = por %p82, %p83
      %p85 = scmp.ne.s32.totalorder %s77, %s80
      %p86 = scmp.eq.s32.totalorder %s18, 0
      %p87 = por %p85, %p86
      %p88 = scmp.ne.s32.totalorder %s77, %s80
      %p89 = scmp.eq.s32.totalorder %s23, 7
      %p90 = por %p88, %p89
      %p91 = scmp.ne.s32.totalorder %s80, %s81
      %p92 = scmp.eq.s32.totalorder %s23, 0
      %p93 = por %p91, %p92
      %p94 = scmp.ne.s32.totalorder %s80, %s81
      %p95 = scmp.eq.s32.totalorder %s24, 7
      %p96 = por %p94, %p95
      %p98 = scmp.ne.s32.totalorder %s81, %s97
      %p99 = scmp.eq.s32.totalorder %s24, 0
      %p100 = por %p98, %p99
      %s101 = ssub.s32 %s25, %s44
      %s102 = ssub.s32 %s27, %s36
      %s103 = sor.u32 %s101, %s102
      %p104 = scmp.eq.s32.totalorder %s103, 0
      %s106 = sadd.s32 %s105, 1
      %s107 = scalar_select %p104, %s105, %s106
      %p110 = pneg %p104
      %p111 = scmp.eq.s32.totalorder %s18, 7
      %p112 = por %p110, %p111
      %p113 = scmp.ne.s32.totalorder %s105, %s108
      %p114 = scmp.eq.s32.totalorder %s18, 0
      %p115 = por %p113, %p114
      %p116 = scmp.ne.s32.totalorder %s105, %s108
      %p117 = scmp.eq.s32.totalorder %s23, 7
      %p118 = por %p116, %p117
      %p119 = scmp.ne.s32.totalorder %s108, %s109
      %p120 = scmp.eq.s32.totalorder %s23, 0
      %p121 = por %p119, %p120
      %p122 = scmp.ne.s32.totalorder %s108, %s109
      %p123 = scmp.eq.s32.totalorder %s24, 7
      %p124 = por %p122, %p123
      %p126 = scmp.ne.s32.totalorder %s109, %s125
      %p127 = scmp.eq.s32.totalorder %s24, 0
      %p128 = por %p126, %p127
      %s129 = ssub.s32 %s25, %s44
      %s130 = ssub.s32 %s26, %s40
      %s131 = sor.u32 %s129, %s130
      %p132 = scmp.eq.s32.totalorder %s131, 0
      %s134 = sadd.s32 %s133, 1
      %s135 = scalar_select %p132, %s133, %s134
      %p138 = pneg %p132
      %p139 = scmp.eq.s32.totalorder %s18, 7
      %p140 = por %p138, %p139
      %p141 = scmp.ne.s32.totalorder %s133, %s136
      %p142 = scmp.eq.s32.totalorder %s18, 0
      %p143 = por %p141, %p142
      %p144 = scmp.ne.s32.totalorder %s133, %s136
      %p145 = scmp.eq.s32.totalorder %s23, 7
      %p146 = por %p144, %p145
      %p147 = scmp.ne.s32.totalorder %s136, %s137
      %p148 = scmp.eq.s32.totalorder %s23, 0
      %p149 = por %p147, %p148
      %p150 = scmp.ne.s32.totalorder %s136, %s137
      %p151 = scmp.eq.s32.totalorder %s24, 7
      %p152 = por %p150, %p151
      %p154 = scmp.ne.s32.totalorder %s137, %s153
      %p155 = scmp.eq.s32.totalorder %s24, 0
      %p156 = por %p154, %p155
      %p157 = scmp.le.s32.totalorder 1, %s18
      %p158 = scmp.lt.s32.totalorder %s18, 9
      %p159 = pnand %p157, %p158
      %p160 = pneg %p159
      // Predicated region
      $region9: #{tpu_custom_call.1} parent=5 // pred_check
        _
      $region10: #{tpu_custom_call.1} parent=5 // pred_check_branch
        %162 = sbr.rel (%p159) target = $region12
      $region11: #{tpu_custom_call.1} parent=5 // pred_region
        %s163 = ssub.s32 %s18, 1
      $region12: #{tpu_custom_call.1} parent=5 // pred_fallthru
        _
      %p164 = scmp.lt.s32.totalorder %s18, 8
      // Predicated region
      $region13: #{tpu_custom_call.1} parent=5 // pred_check
        %p165 = pneg %p164
      $region14: #{tpu_custom_call.1} parent=5 // pred_check_branch
        %167 = sbr.rel (%p165) target = $region16
      $region15: #{tpu_custom_call.1} parent=5 // pred_region
        // Predicated region
        $region17: #{tpu_custom_call.1} parent=15 // pred_check
          %p168 = pneg %p59
        $region18: #{tpu_custom_call.1} parent=15 // pred_check_branch
          %170 = sbr.rel (%p168) target = $region20
        $region19: #{tpu_custom_call.1} parent=15 // pred_region
          %s171 = sand.u32 %s49, 1
          %s172 = scalar_lea.sflag [#allocation6], %s171
          %s173 = sand.u32 %s49, 1
          %s174 = smul.addr %s173, 128
          %s175 = scalar_lea.vmem [#allocation5], %s174
          %s176 = smul.u32 16, %s26
          %178 = vsyncadd %s172, 0
          %s179 = smul.addr %s25, 16
          %s180 = sadd.s32 %s176, %s179
          %s181 = smul.addr %s180, 8
          %s182 = scalar_lea.hbm %s0, %s181
          %s183 = sshll.u32 %s182, 4
          %s184 = int_to_ptr.hbm [resolvable:$true] %s183
          %s185 = sshll.u32 %s175, 4
          %s186 = int_to_ptr.vmem [resolvable:$true] %s185
          %191 = dma.hbm_to_vmem [thread:$0]  %s184, 2048, %s186, %s172, 128, 128, 8
        $region20: #{tpu_custom_call.1} parent=15 // pred_fallthru
          _
        // Predicated region
        $region21: #{tpu_custom_call.1} parent=15 // pred_check
          %p192 = pneg %p87
        $region22: #{tpu_custom_call.1} parent=15 // pred_check_branch
          %194 = sbr.rel (%p192) target = $region24
        $region23: #{tpu_custom_call.1} parent=15 // pred_region
          %s195 = sand.u32 %s18, 1
          %s196 = scalar_lea.sflag [#allocation9], %s195
          %s197 = sand.u32 %s77, 1
          %s198 = smul.addr %s197, 128
          %s199 = scalar_lea.vmem [#allocation8], %s198
          %s200 = smul.u32 16, %s27
          %202 = vsyncadd %s196, 0
          %s203 = smul.addr %s25, 16
          %s204 = sadd.s32 %s200, %s203
          %s205 = smul.addr %s204, 8
          %s206 = scalar_lea.hbm %s1, %s205
          %s207 = sshll.u32 %s206, 4
          %s208 = int_to_ptr.hbm [resolvable:$true] %s207
          %s209 = sshll.u32 %s199, 4
          %s210 = int_to_ptr.vmem [resolvable:$true] %s209
          %215 = dma.hbm_to_vmem [thread:$0]  %s208, 2048, %s210, %s196, 128, 128, 8
        $region24: #{tpu_custom_call.1} parent=15 // pred_fallthru
          _
        // Predicated region
        $region25: #{tpu_custom_call.1} parent=15 // pred_check
          %p216 = pneg %p115
        $region26: #{tpu_custom_call.1} parent=15 // pred_check_branch
          %218 = sbr.rel (%p216) target = $region28
        $region27: #{tpu_custom_call.1} parent=15 // pred_region
          %s219 = sand.u32 %s18, 1
          %s220 = scalar_lea.sflag [#allocation9], %s219
          %s221 = sand.u32 %s105, 1
          %s222 = smul.addr %s221, 128
          %s223 = scalar_lea.vmem [#allocation10], %s222
          %s224 = smul.u32 16, %s27
          %226 = vsyncadd %s220, 0
          %s227 = smul.addr %s25, 16
          %s228 = sadd.s32 %s224, %s227
          %s229 = smul.addr %s228, 8
          %s230 = scalar_lea.hbm %s2, %s229
          %s231 = sshll.u32 %s230, 4
          %s232 = int_to_ptr.hbm [resolvable:$true] %s231
          %s233 = sshll.u32 %s223, 4
          %s234 = int_to_ptr.vmem [resolvable:$true] %s233
          %239 = dma.hbm_to_vmem [thread:$0]  %s232, 2048, %s234, %s220, 128, 128, 8
        $region28: #{tpu_custom_call.1} parent=15 // pred_fallthru
          _
      $region16: #{tpu_custom_call.1} parent=5 // pred_fallthru
        _
      %p240 = scmp.le.s32.totalorder 1, %s18
      %p241 = scmp.lt.s32.totalorder %s18, 9
      %p242 = pnand %p240, %p241
      %p243 = pneg %p242
      // Predicated region
      $region29: #{tpu_custom_call.1} parent=5 // pred_check
        _
      $region30: #{tpu_custom_call.1} parent=5 // pred_check_branch
        %245 = sbr.rel (%p242) target = $region32
      $region31: #{tpu_custom_call.1} parent=5 // pred_region
        %s246 = ssub.s32 %s18, 1
        %s247 = sand.u32 %s52, 1
        %s248 = scalar_lea.sflag [#allocation6], %s247
        %s249 = sand.u32 %s52, 1
        %s250 = smul.addr %s249, 128
        %s251 = scalar_lea.vmem [#allocation5], %s250
        // Predicated region
        $region33: #{tpu_custom_call.1} parent=31 // pred_check
          %p252 = pneg %p65
        $region34: #{tpu_custom_call.1} parent=31 // pred_check_branch
          %254 = sbr.rel (%p252) target = $region36
        $region35: #{tpu_custom_call.1} parent=31 // pred_region
          %256 = dma.done %s248, 2048
        $region36: #{tpu_custom_call.1} parent=31 // pred_fallthru
          _
        %s257 = sand.u32 %s23, 1
        %s258 = scalar_lea.sflag [#allocation9], %s257
        %s259 = sand.u32 %s80, 1
        %s260 = smul.addr %s259, 128
        %s261 = scalar_lea.vmem [#allocation8], %s260
        // Predicated region
        $region37: #{tpu_custom_call.1} parent=31 // pred_check
          %p262 = pneg %p93
        $region38: #{tpu_custom_call.1} parent=31 // pred_check_branch
          %264 = sbr.rel (%p262) target = $region40
        $region39: #{tpu_custom_call.1} parent=31 // pred_region
          %266 = dma.done %s258, 2048
        $region40: #{tpu_custom_call.1} parent=31 // pred_fallthru
          _
        %s267 = sand.u32 %s23, 1
        %s268 = scalar_lea.sflag [#allocation9], %s267
        %s269 = sand.u32 %s108, 1
        %s270 = smul.addr %s269, 128
        %s271 = scalar_lea.vmem [#allocation10], %s270
        // Predicated region
        $region41: #{tpu_custom_call.1} parent=31 // pred_check
          %p272 = pneg %p121
        $region42: #{tpu_custom_call.1} parent=31 // pred_check_branch
          %274 = sbr.rel (%p272) target = $region44
        $region43: #{tpu_custom_call.1} parent=31 // pred_region
          %276 = dma.done %s268, 2048
        $region44: #{tpu_custom_call.1} parent=31 // pred_fallthru
          _
        %s277 = sand.u32 %s52, 1
        %s278 = scalar_lea.sflag [#allocation6], %s277
        %s279 = sand.u32 %s52, 1
        %s280 = smul.addr %s279, 128
        %s281 = scalar_lea.vmem [#allocation5], %s280
        %p282 = pneg %p65
        %p283 = pneg %p62
        %s284 = sand.u32 %s23, 1
        %s285 = scalar_lea.sflag [#allocation9], %s284
        %s286 = sand.u32 %s80, 1
        %s287 = smul.addr %s286, 128
        %s288 = scalar_lea.vmem [#allocation8], %s287
        %p289 = pneg %p93
        %p290 = pneg %p90
        %s291 = sand.u32 %s23, 1
        %s292 = scalar_lea.sflag [#allocation9], %s291
        %s293 = sand.u32 %s108, 1
        %s294 = smul.addr %s293, 128
        %s295 = scalar_lea.vmem [#allocation10], %s294
        %p296 = pneg %p121
        %p297 = pneg %p118
        %p298 = pneg %p149
        %p299 = pneg %p146
        %s300 = sand.u32 %s136, 1
        %s301 = scalar_lea.sflag [#allocation7], %s300
        %s302 = sand.u32 %s136, 1
        %s303 = smul.addr %s302, 128
        %s304 = scalar_lea.vmem [#allocation11], %s303
        %s305 = smul.u32 16, %s29
        %s306 = smul.u32 16, %s30
        %s307 = smul.u32 16, %s30
        %s308 = smul.u32 16, %s29
        %p309 = scmp.eq.s32.totalorder %s30, 0
        // Predicated region
        $region45: #{tpu_custom_call.1} parent=31 // pred_check
          %p310 = pneg %p309
        $region46: #{tpu_custom_call.1} parent=31 // pred_check_branch
          %312 = sbr.rel (%p310) target = $region48
        $region47: #{tpu_custom_call.1} parent=31 // pred_region
          %vm313 = vcmask 7168
          %314 = vst.msk [vmem:[#allocation2] sm:$0xff] %vm313, -inf
          %315 = vst.msk [vmem:[#allocation2 + $0x8] sm:$0xff] %vm313, -inf
          %316 = vst.msk [vmem:[#allocation2 + $0x10] sm:$0xff] %vm313, -inf
          %317 = vst.msk [vmem:[#allocation2 + $0x18] sm:$0xff] %vm313, -inf
          %318 = vst.msk [vmem:[#allocation2 + $0x20] sm:$0xff] %vm313, -inf
          %319 = vst.msk [vmem:[#allocation2 + $0x28] sm:$0xff] %vm313, -inf
          %320 = vst.msk [vmem:[#allocation2 + $0x30] sm:$0xff] %vm313, -inf
          %321 = vst.msk [vmem:[#allocation2 + $0x38] sm:$0xff] %vm313, -inf
          %322 = vst.msk [vmem:[#allocation2 + $0x40] sm:$0xff] %vm313, -inf
          %323 = vst.msk [vmem:[#allocation2 + $0x48] sm:$0xff] %vm313, -inf
          %324 = vst.msk [vmem:[#allocation2 + $0x50] sm:$0xff] %vm313, -inf
          %325 = vst.msk [vmem:[#allocation2 + $0x58] sm:$0xff] %vm313, -inf
          %326 = vst.msk [vmem:[#allocation2 + $0x60] sm:$0xff] %vm313, -inf
          %327 = vst.msk [vmem:[#allocation2 + $0x68] sm:$0xff] %vm313, -inf
          %328 = vst.msk [vmem:[#allocation2 + $0x70] sm:$0xff] %vm313, -inf
          %329 = vst.msk [vmem:[#allocation2 + $0x78] sm:$0xff] %vm313, -inf
          %330 = vst.msk [vmem:[#allocation3] sm:$0xff] %vm313, 0.0
          %331 = vst.msk [vmem:[#allocation3 + $0x8] sm:$0xff] %vm313, 0.0
          %332 = vst.msk [vmem:[#allocation3 + $0x10] sm:$0xff] %vm313, 0.0
          %333 = vst.msk [vmem:[#allocation3 + $0x18] sm:$0xff] %vm313, 0.0
          %334 = vst.msk [vmem:[#allocation3 + $0x20] sm:$0xff] %vm313, 0.0
          %335 = vst.msk [vmem:[#allocation3 + $0x28] sm:$0xff] %vm313, 0.0
          %336 = vst.msk [vmem:[#allocation3 + $0x30] sm:$0xff] %vm313, 0.0
          %337 = vst.msk [vmem:[#allocation3 + $0x38] sm:$0xff] %vm313, 0.0
          %338 = vst.msk [vmem:[#allocation3 + $0x40] sm:$0xff] %vm313, 0.0
          %339 = vst.msk [vmem:[#allocation3 + $0x48] sm:$0xff] %vm313, 0.0
          %340 = vst.msk [vmem:[#allocation3 + $0x50] sm:$0xff] %vm313, 0.0
          %341 = vst.msk [vmem:[#allocation3 + $0x58] sm:$0xff] %vm313, 0.0
          %342 = vst.msk [vmem:[#allocation3 + $0x60] sm:$0xff] %vm313, 0.0
          %343 = vst.msk [vmem:[#allocation3 + $0x68] sm:$0xff] %vm313, 0.0
          %344 = vst.msk [vmem:[#allocation3 + $0x70] sm:$0xff] %vm313, 0.0
          %345 = vst.msk [vmem:[#allocation3 + $0x78] sm:$0xff] %vm313, 0.0
          %346 = vst [vmem:[#allocation4] sm:$0xff] 0.0
          %347 = vst [vmem:[#allocation4 + $0x8] sm:$0xff] 0.0
          %348 = vst [vmem:[#allocation4 + $0x10] sm:$0xff] 0.0
          %349 = vst [vmem:[#allocation4 + $0x18] sm:$0xff] 0.0
          %350 = vst [vmem:[#allocation4 + $0x20] sm:$0xff] 0.0
          %351 = vst [vmem:[#allocation4 + $0x28] sm:$0xff] 0.0
          %352 = vst [vmem:[#allocation4 + $0x30] sm:$0xff] 0.0
          %353 = vst [vmem:[#allocation4 + $0x38] sm:$0xff] 0.0
          %354 = vst [vmem:[#allocation4 + $0x40] sm:$0xff] 0.0
          %355 = vst [vmem:[#allocation4 + $0x48] sm:$0xff] 0.0
          %356 = vst [vmem:[#allocation4 + $0x50] sm:$0xff] 0.0
          %357 = vst [vmem:[#allocation4 + $0x58] sm:$0xff] 0.0
          %358 = vst [vmem:[#allocation4 + $0x60] sm:$0xff] 0.0
          %359 = vst [vmem:[#allocation4 + $0x68] sm:$0xff] 0.0
          %360 = vst [vmem:[#allocation4 + $0x70] sm:$0xff] 0.0
          %361 = vst [vmem:[#allocation4 + $0x78] sm:$0xff] 0.0
        $region48: #{tpu_custom_call.1} parent=31 // pred_fallthru
          _
        %v362 = vld [vmem:[%s251] sm:$0xff]
        %v363 = vld [vmem:[%s251 + $0x8] sm:$0xff]
        %v364 = vld [vmem:[%s251 + $0x10] sm:$0xff]
        %v365 = vld [vmem:[%s251 + $0x18] sm:$0xff]
        %v366 = vld [vmem:[%s251 + $0x20] sm:$0xff]
        %v367 = vld [vmem:[%s251 + $0x28] sm:$0xff]
        %v368 = vld [vmem:[%s251 + $0x30] sm:$0xff]
        %v369 = vld [vmem:[%s251 + $0x38] sm:$0xff]
        %v370 = vld [vmem:[%s251 + $0x40] sm:$0xff]
        %v371 = vld [vmem:[%s251 + $0x48] sm:$0xff]
        %v372 = vld [vmem:[%s251 + $0x50] sm:$0xff]
        %v373 = vld [vmem:[%s251 + $0x58] sm:$0xff]
        %v374 = vld [vmem:[%s251 + $0x60] sm:$0xff]
        %v375 = vld [vmem:[%s251 + $0x68] sm:$0xff]
        %v376 = vld [vmem:[%s251 + $0x70] sm:$0xff]
        %v377 = vld [vmem:[%s251 + $0x78] sm:$0xff]
        %v378 = vld [vmem:[%s261] sm:$0xff]
        %v379 = vld [vmem:[%s261 + $0x8] sm:$0xff]
        %v380 = vld [vmem:[%s261 + $0x10] sm:$0xff]
        %v381 = vld [vmem:[%s261 + $0x18] sm:$0xff]
        %v382 = vld [vmem:[%s261 + $0x20] sm:$0xff]
        %v383 = vld [vmem:[%s261 + $0x28] sm:$0xff]
        %v384 = vld [vmem:[%s261 + $0x30] sm:$0xff]
        %v385 = vld [vmem:[%s261 + $0x38] sm:$0xff]
        %v386 = vld [vmem:[%s261 + $0x40] sm:$0xff]
        %v387 = vld [vmem:[%s261 + $0x48] sm:$0xff]
        %v388 = vld [vmem:[%s261 + $0x50] sm:$0xff]
        %v389 = vld [vmem:[%s261 + $0x58] sm:$0xff]
        %v390 = vld [vmem:[%s261 + $0x60] sm:$0xff]
        %v391 = vld [vmem:[%s261 + $0x68] sm:$0xff]
        %v392 = vld [vmem:[%s261 + $0x70] sm:$0xff]
        %v393 = vld [vmem:[%s261 + $0x78] sm:$0xff]
        %v394 = vld [vmem:[%s271] sm:$0xff]
        %v395 = vld [vmem:[%s271 + $0x8] sm:$0xff]
        %v396 = vld [vmem:[%s271 + $0x10] sm:$0xff]
        %v397 = vld [vmem:[%s271 + $0x18] sm:$0xff]
        %v398 = vld [vmem:[%s271 + $0x20] sm:$0xff]
        %v399 = vld [vmem:[%s271 + $0x28] sm:$0xff]
        %v400 = vld [vmem:[%s271 + $0x30] sm:$0xff]
        %v401 = vld [vmem:[%s271 + $0x38] sm:$0xff]
        %v402 = vld [vmem:[%s271 + $0x40] sm:$0xff]
        %v403 = vld [vmem:[%s271 + $0x48] sm:$0xff]
        %v404 = vld [vmem:[%s271 + $0x50] sm:$0xff]
        %v405 = vld [vmem:[%s271 + $0x58] sm:$0xff]
        %v406 = vld [vmem:[%s271 + $0x60] sm:$0xff]
        %v407 = vld [vmem:[%s271 + $0x68] sm:$0xff]
        %v408 = vld [vmem:[%s271 + $0x70] sm:$0xff]
        %v409 = vld [vmem:[%s271 + $0x78] sm:$0xff]
        %410 = vmatpush.xpose.msra.mxu0 %v393
        %411 = vmatpush.xpose.msra.mxu0 %v392
        %412 = vmatpush.xpose.msra.mxu0 %v391
        %413 = vmatpush.xpose.msra.mxu0 %v390
        %414 = vmatpush.xpose.msra.mxu0 %v389
        %415 = vmatpush.xpose.msra.mxu0 %v388
        %416 = vmatpush.xpose.msra.mxu0 %v387
        %417 = vmatpush.xpose.msra.mxu0 %v386
        %418 = vmatpush.xpose.msra.mxu0 %v385
        %419 = vmatpush.xpose.msra.mxu0 %v384
        %420 = vmatpush.xpose.msra.mxu0 %v383
        %421 = vmatpush.xpose.msra.mxu0 %v382
        %422 = vmatpush.xpose.msra.mxu0 %v381
        %423 = vmatpush.xpose.msra.mxu0 %v380
        %424 = vmatpush.xpose.msra.mxu0 %v379
        %425 = vmatpush.xpose.msra.mxu0 %v378
        %426 = vmatmul.f32.gmra.mxu0 %v362
        %v427 = vpop.f32.mrf.mxu0
        %v428 = vadd.f32 0.0, %v427
        %429 = vmatmul.f32.gmra.mxu0 %v363
        %v430 = vpop.f32.mrf.mxu0
        %v431 = vadd.f32 0.0, %v430
        %432 = vmatmul.f32.gmra.mxu0 %v364
        %v433 = vpop.f32.mrf.mxu0
        %v434 = vadd.f32 0.0, %v433
        %435 = vmatmul.f32.gmra.mxu0 %v365
        %v436 = vpop.f32.mrf.mxu0
        %v437 = vadd.f32 0.0, %v436
        %438 = vmatmul.f32.gmra.mxu0 %v366
        %v439 = vpop.f32.mrf.mxu0
        %v440 = vadd.f32 0.0, %v439
        %441 = vmatmul.f32.gmra.mxu0 %v367
        %v442 = vpop.f32.mrf.mxu0
        %v443 = vadd.f32 0.0, %v442
        %444 = vmatmul.f32.gmra.mxu0 %v368
        %v445 = vpop.f32.mrf.mxu0
        %v446 = vadd.f32 0.0, %v445
        %447 = vmatmul.f32.gmra.mxu0 %v369
        %v448 = vpop.f32.mrf.mxu0
        %v449 = vadd.f32 0.0, %v448
        %450 = vmatmul.f32.gmra.mxu0 %v370
        %v451 = vpop.f32.mrf.mxu0
        %v452 = vadd.f32 0.0, %v451
        %453 = vmatmul.f32.gmra.mxu0 %v371
        %v454 = vpop.f32.mrf.mxu0
        %v455 = vadd.f32 0.0, %v454
        %456 = vmatmul.f32.gmra.mxu0 %v372
        %v457 = vpop.f32.mrf.mxu0
        %v458 = vadd.f32 0.0, %v457
        %459 = vmatmul.f32.gmra.mxu0 %v373
        %v460 = vpop.f32.mrf.mxu0
        %v461 = vadd.f32 0.0, %v460
        %462 = vmatmul.f32.gmra.mxu0 %v374
        %v463 = vpop.f32.mrf.mxu0
        %v464 = vadd.f32 0.0, %v463
        %465 = vmatmul.f32.gmra.mxu0 %v375
        %v466 = vpop.f32.mrf.mxu0
        %v467 = vadd.f32 0.0, %v466
        %468 = vmatmul.f32.gmra.mxu0 %v376
        %v469 = vpop.f32.mrf.mxu0
        %v470 = vadd.f32 0.0, %v469
        %471 = vmatmul.f32.gmra.mxu0 %v377
        %v472 = vpop.f32.mrf.mxu0
        %v473 = vadd.f32 0.0, %v472
        %474 = vdwg.mxu0
        %v475 = vmul.f32 %v428, 0.088388346
        %v476 = vmul.f32 %v431, 0.088388346
        %v477 = vmul.f32 %v434, 0.088388346
        %v478 = vmul.f32 %v437, 0.088388346
        %v479 = vmul.f32 %v440, 0.088388346
        %v480 = vmul.f32 %v443, 0.088388346
        %v481 = vmul.f32 %v446, 0.088388346
        %v482 = vmul.f32 %v449, 0.088388346
        %v483 = vmul.f32 %v452, 0.088388346
        %v484 = vmul.f32 %v455, 0.088388346
        %v485 = vmul.f32 %v458, 0.088388346
        %v486 = vmul.f32 %v461, 0.088388346
        %v487 = vmul.f32 %v464, 0.088388346
        %v488 = vmul.f32 %v467, 0.088388346
        %v489 = vmul.f32 %v470, 0.088388346
        %v490 = vmul.f32 %v473, 0.088388346
        %v491 = vld [vmem:[#allocation2] sm:$0xff]
        %v492 = vld [vmem:[#allocation2 + $0x8] sm:$0xff]
        %v493 = vld [vmem:[#allocation2 + $0x10] sm:$0xff]
        %v494 = vld [vmem:[#allocation2 + $0x18] sm:$0xff]
        %v495 = vld [vmem:[#allocation2 + $0x20] sm:$0xff]
        %v496 = vld [vmem:[#allocation2 + $0x28] sm:$0xff]
        %v497 = vld [vmem:[#allocation2 + $0x30] sm:$0xff]
        %v498 = vld [vmem:[#allocation2 + $0x38] sm:$0xff]
        %v499 = vld [vmem:[#allocation2 + $0x40] sm:$0xff]
        %v500 = vld [vmem:[#allocation2 + $0x48] sm:$0xff]
        %v501 = vld [vmem:[#allocation2 + $0x50] sm:$0xff]
        %v502 = vld [vmem:[#allocation2 + $0x58] sm:$0xff]
        %v503 = vld [vmem:[#allocation2 + $0x60] sm:$0xff]
        %v504 = vld [vmem:[#allocation2 + $0x68] sm:$0xff]
        %v505 = vld [vmem:[#allocation2 + $0x70] sm:$0xff]
        %v506 = vld [vmem:[#allocation2 + $0x78] sm:$0xff]
        %507 = vmax.xlane.f32.xlu0 %v475
        %v508 = vpop.xlane.xlu0 %507
        %509 = vmax.xlane.f32.xlu0 %v476
        %v510 = vpop.xlane.xlu0 %509
        %511 = vmax.xlane.f32.xlu0 %v477
        %v512 = vpop.xlane.xlu0 %511
        %513 = vmax.xlane.f32.xlu0 %v478
        %v514 = vpop.xlane.xlu0 %513
        %515 = vmax.xlane.f32.xlu0 %v479
        %v516 = vpop.xlane.xlu0 %515
        %517 = vmax.xlane.f32.xlu0 %v480
        %v518 = vpop.xlane.xlu0 %517
        %519 = vmax.xlane.f32.xlu0 %v481
        %v520 = vpop.xlane.xlu0 %519
        %521 = vmax.xlane.f32.xlu0 %v482
        %v522 = vpop.xlane.xlu0 %521
        %523 = vmax.xlane.f32.xlu0 %v483
        %v524 = vpop.xlane.xlu0 %523
        %525 = vmax.xlane.f32.xlu0 %v484
        %v526 = vpop.xlane.xlu0 %525
        %527 = vmax.xlane.f32.xlu0 %v485
        %v528 = vpop.xlane.xlu0 %527
        %529 = vmax.xlane.f32.xlu0 %v486
        %v530 = vpop.xlane.xlu0 %529
        %531 = vmax.xlane.f32.xlu0 %v487
        %v532 = vpop.xlane.xlu0 %531
        %533 = vmax.xlane.f32.xlu0 %v488
        %v534 = vpop.xlane.xlu0 %533
        %535 = vmax.xlane.f32.xlu0 %v489
        %v536 = vpop.xlane.xlu0 %535
        %537 = vmax.xlane.f32.xlu0 %v490
        %v538 = vpop.xlane.xlu0 %537
        %v539 = vmax.f32 %v491, %v508
        %v540 = vmax.f32 %v492, %v510
        %v541 = vmax.f32 %v493, %v512
        %v542 = vmax.f32 %v494, %v514
        %v543 = vmax.f32 %v495, %v516
        %v544 = vmax.f32 %v496, %v518
        %v545 = vmax.f32 %v497, %v520
        %v546 = vmax.f32 %v498, %v522
        %v547 = vmax.f32 %v499, %v524
        %v548 = vmax.f32 %v500, %v526
        %v549 = vmax.f32 %v501, %v528
        %v550 = vmax.f32 %v502, %v530
        %v551 = vmax.f32 %v503, %v532
        %v552 = vmax.f32 %v504, %v534
        %v553 = vmax.f32 %v505, %v536
        %v554 = vmax.f32 %v506, %v538
        %v555 = vsub.f32 %v491, %v539
        %v556 = vsub.f32 %v492, %v540
        %v557 = vsub.f32 %v493, %v541
        %v558 = vsub.f32 %v494, %v542
        %v559 = vsub.f32 %v495, %v543
        %v560 = vsub.f32 %v496, %v544
        %v561 = vsub.f32 %v497, %v545
        %v562 = vsub.f32 %v498, %v546
        %v563 = vsub.f32 %v499, %v547
        %v564 = vsub.f32 %v500, %v548
        %v565 = vsub.f32 %v501, %v549
        %v566 = vsub.f32 %v502, %v550
        %v567 = vsub.f32 %v503, %v551
        %v568 = vsub.f32 %v504, %v552
        %v569 = vsub.f32 %v505, %v553
        %v570 = vsub.f32 %v506, %v554
        %v571 = vmul.f32 %v555, 1.442695
        %v572 = vpow.pop %v571
        %v573 = vmul.f32 %v556, 1.442695
        %v574 = vpow.pop %v573
        %v575 = vmul.f32 %v557, 1.442695
        %v576 = vpow.pop %v575
        %v577 = vmul.f32 %v558, 1.442695
        %v578 = vpow.pop %v577
        %v579 = vmul.f32 %v559, 1.442695
        %v580 = vpow.pop %v579
        %v581 = vmul.f32 %v560, 1.442695
        %v582 = vpow.pop %v581
        %v583 = vmul.f32 %v561, 1.442695
        %v584 = vpow.pop %v583
        %v585 = vmul.f32 %v562, 1.442695
        %v586 = vpow.pop %v585
        %v587 = vmul.f32 %v563, 1.442695
        %v588 = vpow.pop %v587
        %v589 = vmul.f32 %v564, 1.442695
        %v590 = vpow.pop %v589
        %v591 = vmul.f32 %v565, 1.442695
        %v592 = vpow.pop %v591
        %v593 = vmul.f32 %v566, 1.442695
        %v594 = vpow.pop %v593
        %v595 = vmul.f32 %v567, 1.442695
        %v596 = vpow.pop %v595
        %v597 = vmul.f32 %v568, 1.442695
        %v598 = vpow.pop %v597
        %v599 = vmul.f32 %v569, 1.442695
        %v600 = vpow.pop %v599
        %v601 = vmul.f32 %v570, 1.442695
        %v602 = vpow.pop %v601
        %604 = vset.pattern.permute.xlu0 0
        %605 = vperm.xlu0 %604, %v539
        %v606 = vpop.permute.xlu0 %605
        %609 = vset.pattern.permute.xlu0 0
        %610 = vperm.xlu0 %609, %v540
        %v611 = vpop.permute.xlu0 %610
        %614 = vset.pattern.permute.xlu0 0
        %615 = vperm.xlu0 %614, %v541
        %v616 = vpop.permute.xlu0 %615
        %619 = vset.pattern.permute.xlu0 0
        %620 = vperm.xlu0 %619, %v542
        %v621 = vpop.permute.xlu0 %620
        %624 = vset.pattern.permute.xlu0 0
        %625 = vperm.xlu0 %624, %v543
        %v626 = vpop.permute.xlu0 %625
        %629 = vset.pattern.permute.xlu0 0
        %630 = vperm.xlu0 %629, %v544
        %v631 = vpop.permute.xlu0 %630
        %634 = vset.pattern.permute.xlu0 0
        %635 = vperm.xlu0 %634, %v545
        %v636 = vpop.permute.xlu0 %635
        %639 = vset.pattern.permute.xlu0 0
        %640 = vperm.xlu0 %639, %v546
        %v641 = vpop.permute.xlu0 %640
        %644 = vset.pattern.permute.xlu0 0
        %645 = vperm.xlu0 %644, %v547
        %v646 = vpop.permute.xlu0 %645
        %649 = vset.pattern.permute.xlu0 0
        %650 = vperm.xlu0 %649, %v548
        %v651 = vpop.permute.xlu0 %650
        %654 = vset.pattern.permute.xlu0 0
        %655 = vperm.xlu0 %654, %v549
        %v656 = vpop.permute.xlu0 %655
        %659 = vset.pattern.permute.xlu0 0
        %660 = vperm.xlu0 %659, %v550
        %v661 = vpop.permute.xlu0 %660
        %664 = vset.pattern.permute.xlu0 0
        %665 = vperm.xlu0 %664, %v551
        %v666 = vpop.permute.xlu0 %665
        %669 = vset.pattern.permute.xlu0 0
        %670 = vperm.xlu0 %669, %v552
        %v671 = vpop.permute.xlu0 %670
        %674 = vset.pattern.permute.xlu0 0
        %675 = vperm.xlu0 %674, %v553
        %v676 = vpop.permute.xlu0 %675
        %679 = vset.pattern.permute.xlu0 0
        %680 = vperm.xlu0 %679, %v554
        %v681 = vpop.permute.xlu0 %680
        %v683 = vsub.f32 %v475, %v606
        %v684 = vsub.f32 %v476, %v611
        %v685 = vsub.f32 %v477, %v616
        %v686 = vsub.f32 %v478, %v621
        %v687 = vsub.f32 %v479, %v626
        %v688 = vsub.f32 %v480, %v631
        %v689 = vsub.f32 %v481, %v636
        %v690 = vsub.f32 %v482, %v641
        %v691 = vsub.f32 %v483, %v646
        %v692 = vsub.f32 %v484, %v651
        %v693 = vsub.f32 %v485, %v656
        %v694 = vsub.f32 %v486, %v661
        %v695 = vsub.f32 %v487, %v666
        %v696 = vsub.f32 %v488, %v671
        %v697 = vsub.f32 %v489, %v676
        %v698 = vsub.f32 %v490, %v681
        %v699 = vmul.f32 %v683, 1.442695
        %v700 = vpow.pop %v699
        %v701 = vmul.f32 %v684, 1.442695
        %v702 = vpow.pop %v701
        %v703 = vmul.f32 %v685, 1.442695
        %v704 = vpow.pop %v703
        %v705 = vmul.f32 %v686, 1.442695
        %v706 = vpow.pop %v705
        %v707 = vmul.f32 %v687, 1.442695
        %v708 = vpow.pop %v707
        %v709 = vmul.f32 %v688, 1.442695
        %v710 = vpow.pop %v709
        %v711 = vmul.f32 %v689, 1.442695
        %v712 = vpow.pop %v711
        %v713 = vmul.f32 %v690, 1.442695
        %v714 = vpow.pop %v713
        %v715 = vmul.f32 %v691, 1.442695
        %v716 = vpow.pop %v715
        %v717 = vmul.f32 %v692, 1.442695
        %v718 = vpow.pop %v717
        %v719 = vmul.f32 %v693, 1.442695
        %v720 = vpow.pop %v719
        %v721 = vmul.f32 %v694, 1.442695
        %v722 = vpow.pop %v721
        %v723 = vmul.f32 %v695, 1.442695
        %v724 = vpow.pop %v723
        %v725 = vmul.f32 %v696, 1.442695
        %v726 = vpow.pop %v725
        %v727 = vmul.f32 %v697, 1.442695
        %v728 = vpow.pop %v727
        %v729 = vmul.f32 %v698, 1.442695
        %v730 = vpow.pop %v729
        %v731 = vld [vmem:[#allocation3] sm:$0xff]
        %v732 = vld [vmem:[#allocation3 + $0x8] sm:$0xff]
        %v733 = vld [vmem:[#allocation3 + $0x10] sm:$0xff]
        %v734 = vld [vmem:[#allocation3 + $0x18] sm:$0xff]
        %v735 = vld [vmem:[#allocation3 + $0x20] sm:$0xff]
        %v736 = vld [vmem:[#allocation3 + $0x28] sm:$0xff]
        %v737 = vld [vmem:[#allocation3 + $0x30] sm:$0xff]
        %v738 = vld [vmem:[#allocation3 + $0x38] sm:$0xff]
        %v739 = vld [vmem:[#allocation3 + $0x40] sm:$0xff]
        %v740 = vld [vmem:[#allocation3 + $0x48] sm:$0xff]
        %v741 = vld [vmem:[#allocation3 + $0x50] sm:$0xff]
        %v742 = vld [vmem:[#allocation3 + $0x58] sm:$0xff]
        %v743 = vld [vmem:[#allocation3 + $0x60] sm:$0xff]
        %v744 = vld [vmem:[#allocation3 + $0x68] sm:$0xff]
        %v745 = vld [vmem:[#allocation3 + $0x70] sm:$0xff]
        %v746 = vld [vmem:[#allocation3 + $0x78] sm:$0xff]
        %v747 = vmul.f32 %v572, %v731
        %v748 = vmul.f32 %v574, %v732
        %v749 = vmul.f32 %v576, %v733
        %v750 = vmul.f32 %v578, %v734
        %v751 = vmul.f32 %v580, %v735
        %v752 = vmul.f32 %v582, %v736
        %v753 = vmul.f32 %v584, %v737
        %v754 = vmul.f32 %v586, %v738
        %v755 = vmul.f32 %v588, %v739
        %v756 = vmul.f32 %v590, %v740
        %v757 = vmul.f32 %v592, %v741
        %v758 = vmul.f32 %v594, %v742
        %v759 = vmul.f32 %v596, %v743
        %v760 = vmul.f32 %v598, %v744
        %v761 = vmul.f32 %v600, %v745
        %v762 = vmul.f32 %v602, %v746
        %763 = vadd.xlane.f32.xlu0 %v700
        %v764 = vpop.xlane.xlu0 %763
        %765 = vadd.xlane.f32.xlu0 %v702
        %v766 = vpop.xlane.xlu0 %765
        %767 = vadd.xlane.f32.xlu0 %v704
        %v768 = vpop.xlane.xlu0 %767
        %769 = vadd.xlane.f32.xlu0 %v706
        %v770 = vpop.xlane.xlu0 %769
        %771 = vadd.xlane.f32.xlu0 %v708
        %v772 = vpop.xlane.xlu0 %771
        %773 = vadd.xlane.f32.xlu0 %v710
        %v774 = vpop.xlane.xlu0 %773
        %775 = vadd.xlane.f32.xlu0 %v712
        %v776 = vpop.xlane.xlu0 %775
        %777 = vadd.xlane.f32.xlu0 %v714
        %v778 = vpop.xlane.xlu0 %777
        %779 = vadd.xlane.f32.xlu0 %v716
        %v780 = vpop.xlane.xlu0 %779
        %781 = vadd.xlane.f32.xlu0 %v718
        %v782 = vpop.xlane.xlu0 %781
        %783 = vadd.xlane.f32.xlu0 %v720
        %v784 = vpop.xlane.xlu0 %783
        %785 = vadd.xlane.f32.xlu0 %v722
        %v786 = vpop.xlane.xlu0 %785
        %787 = vadd.xlane.f32.xlu0 %v724
        %v788 = vpop.xlane.xlu0 %787
        %789 = vadd.xlane.f32.xlu0 %v726
        %v790 = vpop.xlane.xlu0 %789
        %791 = vadd.xlane.f32.xlu0 %v728
        %v792 = vpop.xlane.xlu0 %791
        %793 = vadd.xlane.f32.xlu0 %v730
        %v794 = vpop.xlane.xlu0 %793
        %v795 = vadd.f32 %v747, %v764
        %v796 = vadd.f32 %v748, %v766
        %v797 = vadd.f32 %v749, %v768
        %v798 = vadd.f32 %v750, %v770
        %v799 = vadd.f32 %v751, %v772
        %v800 = vadd.f32 %v752, %v774
        %v801 = vadd.f32 %v753, %v776
        %v802 = vadd.f32 %v754, %v778
        %v803 = vadd.f32 %v755, %v780
        %v804 = vadd.f32 %v756, %v782
        %v805 = vadd.f32 %v757, %v784
        %v806 = vadd.f32 %v758, %v786
        %v807 = vadd.f32 %v759, %v788
        %v808 = vadd.f32 %v760, %v790
        %v809 = vadd.f32 %v761, %v792
        %v810 = vadd.f32 %v762, %v794
        %vm811 = vcmask 7168
        %812 = vst.msk [vmem:[#allocation3] sm:$0xff] %vm811, %v795
        %813 = vst.msk [vmem:[#allocation3 + $0x8] sm:$0xff] %vm811, %v796
        %814 = vst.msk [vmem:[#allocation3 + $0x10] sm:$0xff] %vm811, %v797
        %815 = vst.msk [vmem:[#allocation3 + $0x18] sm:$0xff] %vm811, %v798
        %816 = vst.msk [vmem:[#allocation3 + $0x20] sm:$0xff] %vm811, %v799
        %817 = vst.msk [vmem:[#allocation3 + $0x28] sm:$0xff] %vm811, %v800
        %818 = vst.msk [vmem:[#allocation3 + $0x30] sm:$0xff] %vm811, %v801
        %819 = vst.msk [vmem:[#allocation3 + $0x38] sm:$0xff] %vm811, %v802
        %820 = vst.msk [vmem:[#allocation3 + $0x40] sm:$0xff] %vm811, %v803
        %821 = vst.msk [vmem:[#allocation3 + $0x48] sm:$0xff] %vm811, %v804
        %822 = vst.msk [vmem:[#allocation3 + $0x50] sm:$0xff] %vm811, %v805
        %823 = vst.msk [vmem:[#allocation3 + $0x58] sm:$0xff] %vm811, %v806
        %824 = vst.msk [vmem:[#allocation3 + $0x60] sm:$0xff] %vm811, %v807
        %825 = vst.msk [vmem:[#allocation3 + $0x68] sm:$0xff] %vm811, %v808
        %826 = vst.msk [vmem:[#allocation3 + $0x70] sm:$0xff] %vm811, %v809
        %827 = vst.msk [vmem:[#allocation3 + $0x78] sm:$0xff] %vm811, %v810
        %v828 = vld [vmem:[#allocation4] sm:$0xff]
        %v829 = vld [vmem:[#allocation4 + $0x8] sm:$0xff]
        %v830 = vld [vmem:[#allocation4 + $0x10] sm:$0xff]
        %v831 = vld [vmem:[#allocation4 + $0x18] sm:$0xff]
        %v832 = vld [vmem:[#allocation4 + $0x20] sm:$0xff]
        %v833 = vld [vmem:[#allocation4 + $0x28] sm:$0xff]
        %v834 = vld [vmem:[#allocation4 + $0x30] sm:$0xff]
        %v835 = vld [vmem:[#allocation4 + $0x38] sm:$0xff]
        %v836 = vld [vmem:[#allocation4 + $0x40] sm:$0xff]
        %v837 = vld [vmem:[#allocation4 + $0x48] sm:$0xff]
        %v838 = vld [vmem:[#allocation4 + $0x50] sm:$0xff]
        %v839 = vld [vmem:[#allocation4 + $0x58] sm:$0xff]
        %v840 = vld [vmem:[#allocation4 + $0x60] sm:$0xff]
        %v841 = vld [vmem:[#allocation4 + $0x68] sm:$0xff]
        %v842 = vld [vmem:[#allocation4 + $0x70] sm:$0xff]
        %v843 = vld [vmem:[#allocation4 + $0x78] sm:$0xff]
        %845 = vset.pattern.permute.xlu0 0
        %846 = vperm.xlu0 %845, %v572
        %v847 = vpop.permute.xlu0 %846
        %850 = vset.pattern.permute.xlu0 0
        %851 = vperm.xlu0 %850, %v574
        %v852 = vpop.permute.xlu0 %851
        %855 = vset.pattern.permute.xlu0 0
        %856 = vperm.xlu0 %855, %v576
        %v857 = vpop.permute.xlu0 %856
        %860 = vset.pattern.permute.xlu0 0
        %861 = vperm.xlu0 %860, %v578
        %v862 = vpop.permute.xlu0 %861
        %865 = vset.pattern.permute.xlu0 0
        %866 = vperm.xlu0 %865, %v580
        %v867 = vpop.permute.xlu0 %866
        %870 = vset.pattern.permute.xlu0 0
        %871 = vperm.xlu0 %870, %v582
        %v872 = vpop.permute.xlu0 %871
        %875 = vset.pattern.permute.xlu0 0
        %876 = vperm.xlu0 %875, %v584
        %v877 = vpop.permute.xlu0 %876
        %880 = vset.pattern.permute.xlu0 0
        %881 = vperm.xlu0 %880, %v586
        %v882 = vpop.permute.xlu0 %881
        %885 = vset.pattern.permute.xlu0 0
        %886 = vperm.xlu0 %885, %v588
        %v887 = vpop.permute.xlu0 %886
        %890 = vset.pattern.permute.xlu0 0
        %891 = vperm.xlu0 %890, %v590
        %v892 = vpop.permute.xlu0 %891
        %895 = vset.pattern.permute.xlu0 0
        %896 = vperm.xlu0 %895, %v592
        %v897 = vpop.permute.xlu0 %896
        %900 = vset.pattern.permute.xlu0 0
        %901 = vperm.xlu0 %900, %v594
        %v902 = vpop.permute.xlu0 %901
        %905 = vset.pattern.permute.xlu0 0
        %906 = vperm.xlu0 %905, %v596
        %v907 = vpop.permute.xlu0 %906
        %910 = vset.pattern.permute.xlu0 0
        %911 = vperm.xlu0 %910, %v598
        %v912 = vpop.permute.xlu0 %911
        %915 = vset.pattern.permute.xlu0 0
        %916 = vperm.xlu0 %915, %v600
        %v917 = vpop.permute.xlu0 %916
        %920 = vset.pattern.permute.xlu0 0
        %921 = vperm.xlu0 %920, %v602
        %v922 = vpop.permute.xlu0 %921
        %v924 = vmul.f32 %v847, %v828
        %v925 = vmul.f32 %v852, %v829
        %v926 = vmul.f32 %v857, %v830
        %v927 = vmul.f32 %v862, %v831
        %v928 = vmul.f32 %v867, %v832
        %v929 = vmul.f32 %v872, %v833
        %v930 = vmul.f32 %v877, %v834
        %v931 = vmul.f32 %v882, %v835
        %v932 = vmul.f32 %v887, %v836
        %v933 = vmul.f32 %v892, %v837
        %v934 = vmul.f32 %v897, %v838
        %v935 = vmul.f32 %v902, %v839
        %v936 = vmul.f32 %v907, %v840
        %v937 = vmul.f32 %v912, %v841
        %v938 = vmul.f32 %v917, %v842
        %v939 = vmul.f32 %v922, %v843
        %940 = vmatpush.msra.mxu0 %v409
        %941 = vmatpush.msra.mxu0 %v408
        %942 = vmatpush.msra.mxu0 %v407
        %943 = vmatpush.msra.mxu0 %v406
        %944 = vmatpush.msra.mxu0 %v405
        %945 = vmatpush.msra.mxu0 %v404
        %946 = vmatpush.msra.mxu0 %v403
        %947 = vmatpush.msra.mxu0 %v402
        %948 = vmatpush.msra.mxu0 %v401
        %949 = vmatpush.msra.mxu0 %v400
        %950 = vmatpush.msra.mxu0 %v399
        %951 = vmatpush.msra.mxu0 %v398
        %952 = vmatpush.msra.mxu0 %v397
        %953 = vmatpush.msra.mxu0 %v396
        %954 = vmatpush.msra.mxu0 %v395
        %955 = vmatpush.msra.mxu0 %v394
        %956 = vmatmul.f32.gmra.mxu0 %v700
        %v957 = vpop.f32.mrf.mxu0
        %v958 = vadd.f32 0.0, %v957
        %959 = vmatmul.f32.gmra.mxu0 %v702
        %v960 = vpop.f32.mrf.mxu0
        %v961 = vadd.f32 0.0, %v960
        %962 = vmatmul.f32.gmra.mxu0 %v704
        %v963 = vpop.f32.mrf.mxu0
        %v964 = vadd.f32 0.0, %v963
        %965 = vmatmul.f32.gmra.mxu0 %v706
        %v966 = vpop.f32.mrf.mxu0
        %v967 = vadd.f32 0.0, %v966
        %968 = vmatmul.f32.gmra.mxu0 %v708
        %v969 = vpop.f32.mrf.mxu0
        %v970 = vadd.f32 0.0, %v969
        %971 = vmatmul.f32.gmra.mxu0 %v710
        %v972 = vpop.f32.mrf.mxu0
        %v973 = vadd.f32 0.0, %v972
        %974 = vmatmul.f32.gmra.mxu0 %v712
        %v975 = vpop.f32.mrf.mxu0
        %v976 = vadd.f32 0.0, %v975
        %977 = vmatmul.f32.gmra.mxu0 %v714
        %v978 = vpop.f32.mrf.mxu0
        %v979 = vadd.f32 0.0, %v978
        %980 = vmatmul.f32.gmra.mxu0 %v716
        %v981 = vpop.f32.mrf.mxu0
        %v982 = vadd.f32 0.0, %v981
        %983 = vmatmul.f32.gmra.mxu0 %v718
        %v984 = vpop.f32.mrf.mxu0
        %v985 = vadd.f32 0.0, %v984
        %986 = vmatmul.f32.gmra.mxu0 %v720
        %v987 = vpop.f32.mrf.mxu0
        %v988 = vadd.f32 0.0, %v987
        %989 = vmatmul.f32.gmra.mxu0 %v722
        %v990 = vpop.f32.mrf.mxu0
        %v991 = vadd.f32 0.0, %v990
        %992 = vmatmul.f32.gmra.mxu0 %v724
        %v993 = vpop.f32.mrf.mxu0
        %v994 = vadd.f32 0.0, %v993
        %995 = vmatmul.f32.gmra.mxu0 %v726
        %v996 = vpop.f32.mrf.mxu0
        %v997 = vadd.f32 0.0, %v996
        %998 = vmatmul.f32.gmra.mxu0 %v728
        %v999 = vpop.f32.mrf.mxu0
        %v1000 = vadd.f32 0.0, %v999
        %1001 = vmatmul.f32.gmra.mxu0 %v730
        %v1002 = vpop.f32.mrf.mxu0
        %v1003 = vadd.f32 0.0, %v1002
        %1004 = vdwg.mxu0
        %v1005 = vadd.f32 %v924, %v958
        %v1006 = vadd.f32 %v925, %v961
        %v1007 = vadd.f32 %v926, %v964
        %v1008 = vadd.f32 %v927, %v967
        %v1009 = vadd.f32 %v928, %v970
        %v1010 = vadd.f32 %v929, %v973
        %v1011 = vadd.f32 %v930, %v976
        %v1012 = vadd.f32 %v931, %v979
        %v1013 = vadd.f32 %v932, %v982
        %v1014 = vadd.f32 %v933, %v985
        %v1015 = vadd.f32 %v934, %v988
        %v1016 = vadd.f32 %v935, %v991
        %v1017 = vadd.f32 %v936, %v994
        %v1018 = vadd.f32 %v937, %v997
        %v1019 = vadd.f32 %v938, %v1000
        %v1020 = vadd.f32 %v939, %v1003
        %1021 = vst [vmem:[#allocation4] sm:$0xff] %v1005
        %1022 = vst [vmem:[#allocation4 + $0x8] sm:$0xff] %v1006
        %1023 = vst [vmem:[#allocation4 + $0x10] sm:$0xff] %v1007
        %1024 = vst [vmem:[#allocation4 + $0x18] sm:$0xff] %v1008
        %1025 = vst [vmem:[#allocation4 + $0x20] sm:$0xff] %v1009
        %1026 = vst [vmem:[#allocation4 + $0x28] sm:$0xff] %v1010
        %1027 = vst [vmem:[#allocation4 + $0x30] sm:$0xff] %v1011
        %1028 = vst [vmem:[#allocation4 + $0x38] sm:$0xff] %v1012
        %1029 = vst [vmem:[#allocation4 + $0x40] sm:$0xff] %v1013
        %1030 = vst [vmem:[#allocation4 + $0x48] sm:$0xff] %v1014
        %1031 = vst [vmem:[#allocation4 + $0x50] sm:$0xff] %v1015
        %1032 = vst [vmem:[#allocation4 + $0x58] sm:$0xff] %v1016
        %1033 = vst [vmem:[#allocation4 + $0x60] sm:$0xff] %v1017
        %1034 = vst [vmem:[#allocation4 + $0x68] sm:$0xff] %v1018
        %1035 = vst [vmem:[#allocation4 + $0x70] sm:$0xff] %v1019
        %1036 = vst [vmem:[#allocation4 + $0x78] sm:$0xff] %v1020
        %1037 = vst.msk [vmem:[#allocation2] sm:$0xff] %vm811, %v539
        %1038 = vst.msk [vmem:[#allocation2 + $0x8] sm:$0xff] %vm811, %v540
        %1039 = vst.msk [vmem:[#allocation2 + $0x10] sm:$0xff] %vm811, %v541
        %1040 = vst.msk [vmem:[#allocation2 + $0x18] sm:$0xff] %vm811, %v542
        %1041 = vst.msk [vmem:[#allocation2 + $0x20] sm:$0xff] %vm811, %v543
        %1042 = vst.msk [vmem:[#allocation2 + $0x28] sm:$0xff] %vm811, %v544
        %1043 = vst.msk [vmem:[#allocation2 + $0x30] sm:$0xff] %vm811, %v545
        %1044 = vst.msk [vmem:[#allocation2 + $0x38] sm:$0xff] %vm811, %v546
        %1045 = vst.msk [vmem:[#allocation2 + $0x40] sm:$0xff] %vm811, %v547
        %1046 = vst.msk [vmem:[#allocation2 + $0x48] sm:$0xff] %vm811, %v548
        %1047 = vst.msk [vmem:[#allocation2 + $0x50] sm:$0xff] %vm811, %v549
        %1048 = vst.msk [vmem:[#allocation2 + $0x58] sm:$0xff] %vm811, %v550
        %1049 = vst.msk [vmem:[#allocation2 + $0x60] sm:$0xff] %vm811, %v551
        %1050 = vst.msk [vmem:[#allocation2 + $0x68] sm:$0xff] %vm811, %v552
        %1051 = vst.msk [vmem:[#allocation2 + $0x70] sm:$0xff] %vm811, %v553
        %1052 = vst.msk [vmem:[#allocation2 + $0x78] sm:$0xff] %vm811, %v554
        // Predicated region
        $region49: #{tpu_custom_call.1} parent=31 // pred_check
          %p1053 = pneg %p309
        $region50: #{tpu_custom_call.1} parent=31 // pred_check_branch
          %1055 = sbr.rel (%p1053) target = $region52
        $region51: #{tpu_custom_call.1} parent=31 // pred_region
          %v1056 = vld [vmem:[#allocation4] sm:$0xff]
          %v1057 = vld [vmem:[#allocation4 + $0x8] sm:$0xff]
          %v1058 = vld [vmem:[#allocation4 + $0x10] sm:$0xff]
          %v1059 = vld [vmem:[#allocation4 + $0x18] sm:$0xff]
          %v1060 = vld [vmem:[#allocation4 + $0x20] sm:$0xff]
          %v1061 = vld [vmem:[#allocation4 + $0x28] sm:$0xff]
          %v1062 = vld [vmem:[#allocation4 + $0x30] sm:$0xff]
          %v1063 = vld [vmem:[#allocation4 + $0x38] sm:$0xff]
          %v1064 = vld [vmem:[#allocation4 + $0x40] sm:$0xff]
          %v1065 = vld [vmem:[#allocation4 + $0x48] sm:$0xff]
          %v1066 = vld [vmem:[#allocation4 + $0x50] sm:$0xff]
          %v1067 = vld [vmem:[#allocation4 + $0x58] sm:$0xff]
          %v1068 = vld [vmem:[#allocation4 + $0x60] sm:$0xff]
          %v1069 = vld [vmem:[#allocation4 + $0x68] sm:$0xff]
          %v1070 = vld [vmem:[#allocation4 + $0x70] sm:$0xff]
          %v1071 = vld [vmem:[#allocation4 + $0x78] sm:$0xff]
          %v1072 = vld [vmem:[#allocation3] sm:$0xff]
          %v1073 = vld [vmem:[#allocation3 + $0x8] sm:$0xff]
          %v1074 = vld [vmem:[#allocation3 + $0x10] sm:$0xff]
          %v1075 = vld [vmem:[#allocation3 + $0x18] sm:$0xff]
          %v1076 = vld [vmem:[#allocation3 + $0x20] sm:$0xff]
          %v1077 = vld [vmem:[#allocation3 + $0x28] sm:$0xff]
          %v1078 = vld [vmem:[#allocation3 + $0x30] sm:$0xff]
          %v1079 = vld [vmem:[#allocation3 + $0x38] sm:$0xff]
          %v1080 = vld [vmem:[#allocation3 + $0x40] sm:$0xff]
          %v1081 = vld [vmem:[#allocation3 + $0x48] sm:$0xff]
          %v1082 = vld [vmem:[#allocation3 + $0x50] sm:$0xff]
          %v1083 = vld [vmem:[#allocation3 + $0x58] sm:$0xff]
          %v1084 = vld [vmem:[#allocation3 + $0x60] sm:$0xff]
          %v1085 = vld [vmem:[#allocation3 + $0x68] sm:$0xff]
          %v1086 = vld [vmem:[#allocation3 + $0x70] sm:$0xff]
          %v1087 = vld [vmem:[#allocation3 + $0x78] sm:$0xff]
          %1089 = vset.pattern.permute.xlu0 0
          %1090 = vperm.xlu0 %1089, %v1072
          %v1091 = vpop.permute.xlu0 %1090
          %1094 = vset.pattern.permute.xlu0 0
          %1095 = vperm.xlu0 %1094, %v1073
          %v1096 = vpop.permute.xlu0 %1095
          %1099 = vset.pattern.permute.xlu0 0
          %1100 = vperm.xlu0 %1099, %v1074
          %v1101 = vpop.permute.xlu0 %1100
          %1104 = vset.pattern.permute.xlu0 0
          %1105 = vperm.xlu0 %1104, %v1075
          %v1106 = vpop.permute.xlu0 %1105
          %1109 = vset.pattern.permute.xlu0 0
          %1110 = vperm.xlu0 %1109, %v1076
          %v1111 = vpop.permute.xlu0 %1110
          %1114 = vset.pattern.permute.xlu0 0
          %1115 = vperm.xlu0 %1114, %v1077
          %v1116 = vpop.permute.xlu0 %1115
          %1119 = vset.pattern.permute.xlu0 0
          %1120 = vperm.xlu0 %1119, %v1078
          %v1121 = vpop.permute.xlu0 %1120
          %1124 = vset.pattern.permute.xlu0 0
          %1125 = vperm.xlu0 %1124, %v1079
          %v1126 = vpop.permute.xlu0 %1125
          %1129 = vset.pattern.permute.xlu0 0
          %1130 = vperm.xlu0 %1129, %v1080
          %v1131 = vpop.permute.xlu0 %1130
          %1134 = vset.pattern.permute.xlu0 0
          %1135 = vperm.xlu0 %1134, %v1081
          %v1136 = vpop.permute.xlu0 %1135
          %1139 = vset.pattern.permute.xlu0 0
          %1140 = vperm.xlu0 %1139, %v1082
          %v1141 = vpop.permute.xlu0 %1140
          %1144 = vset.pattern.permute.xlu0 0
          %1145 = vperm.xlu0 %1144, %v1083
          %v1146 = vpop.permute.xlu0 %1145
          %1149 = vset.pattern.permute.xlu0 0
          %1150 = vperm.xlu0 %1149, %v1084
          %v1151 = vpop.permute.xlu0 %1150
          %1154 = vset.pattern.permute.xlu0 0
          %1155 = vperm.xlu0 %1154, %v1085
          %v1156 = vpop.permute.xlu0 %1155
          %1159 = vset.pattern.permute.xlu0 0
          %1160 = vperm.xlu0 %1159, %v1086
          %v1161 = vpop.permute.xlu0 %1160
          %1164 = vset.pattern.permute.xlu0 0
          %1165 = vperm.xlu0 %1164, %v1087
          %v1166 = vpop.permute.xlu0 %1165
          %v1168 = vrcp.pop %v1091
          %v1169 = vmul.f32 %v1091, %v1168
          %v1170 = vsub.f32 1.0, %v1169
          %v1171 = vmul.f32 %v1168, %v1170
          %v1172 = vadd.f32 %v1168, %v1171
          %vm1173 = vweird.f32 %v1091
          %vm1174 = vweird.f32 %v1168
          %vm1175 = vmor %vm1173, %vm1174
          %v1176 = vsel %vm1175, %v1168, %v1172
          %v1177 = vand.u32 2147483647, %v1091
          %vm1178 = vcmp.eq.f32.partialorder %v1177, 8.507059e+37
          %v1179 = vand.u32 %v1091, 2147483648
          %v1180 = vor.u32 1.1754944e-38, %v1179
          %v1181 = vsel %vm1178, %v1180, %v1176
          %v1182 = vmul.f32 %v1056, %v1181
          %v1183 = vrcp.pop %v1096
          %v1184 = vmul.f32 %v1096, %v1183
          %v1185 = vsub.f32 1.0, %v1184
          %v1186 = vmul.f32 %v1183, %v1185
          %v1187 = vadd.f32 %v1183, %v1186
          %vm1188 = vweird.f32 %v1096
          %vm1189 = vweird.f32 %v1183
          %vm1190 = vmor %vm1188, %vm1189
          %v1191 = vsel %vm1190, %v1183, %v1187
          %v1192 = vand.u32 2147483647, %v1096
          %vm1193 = vcmp.eq.f32.partialorder %v1192, 8.507059e+37
          %v1194 = vand.u32 %v1096, 2147483648
          %v1195 = vor.u32 1.1754944e-38, %v1194
          %v1196 = vsel %vm1193, %v1195, %v1191
          %v1197 = vmul.f32 %v1057, %v1196
          %v1198 = vrcp.pop %v1101
          %v1199 = vmul.f32 %v1101, %v1198
          %v1200 = vsub.f32 1.0, %v1199
          %v1201 = vmul.f32 %v1198, %v1200
          %v1202 = vadd.f32 %v1198, %v1201
          %vm1203 = vweird.f32 %v1101
          %vm1204 = vweird.f32 %v1198
          %vm1205 = vmor %vm1203, %vm1204
          %v1206 = vsel %vm1205, %v1198, %v1202
          %v1207 = vand.u32 2147483647, %v1101
          %vm1208 = vcmp.eq.f32.partialorder %v1207, 8.507059e+37
          %v1209 = vand.u32 %v1101, 2147483648
          %v1210 = vor.u32 1.1754944e-38, %v1209
          %v1211 = vsel %vm1208, %v1210, %v1206
          %v1212 = vmul.f32 %v1058, %v1211
          %v1213 = vrcp.pop %v1106
          %v1214 = vmul.f32 %v1106, %v1213
          %v1215 = vsub.f32 1.0, %v1214
          %v1216 = vmul.f32 %v1213, %v1215
          %v1217 = vadd.f32 %v1213, %v1216
          %vm1218 = vweird.f32 %v1106
          %vm1219 = vweird.f32 %v1213
          %vm1220 = vmor %vm1218, %vm1219
          %v1221 = vsel %vm1220, %v1213, %v1217
          %v1222 = vand.u32 2147483647, %v1106
          %vm1223 = vcmp.eq.f32.partialorder %v1222, 8.507059e+37
          %v1224 = vand.u32 %v1106, 2147483648
          %v1225 = vor.u32 1.1754944e-38, %v1224
          %v1226 = vsel %vm1223, %v1225, %v1221
          %v1227 = vmul.f32 %v1059, %v1226
          %v1228 = vrcp.pop %v1111
          %v1229 = vmul.f32 %v1111, %v1228
          %v1230 = vsub.f32 1.0, %v1229
          %v1231 = vmul.f32 %v1228, %v1230
          %v1232 = vadd.f32 %v1228, %v1231
          %vm1233 = vweird.f32 %v1111
          %vm1234 = vweird.f32 %v1228
          %vm1235 = vmor %vm1233, %vm1234
          %v1236 = vsel %vm1235, %v1228, %v1232
          %v1237 = vand.u32 2147483647, %v1111
          %vm1238 = vcmp.eq.f32.partialorder %v1237, 8.507059e+37
          %v1239 = vand.u32 %v1111, 2147483648
          %v1240 = vor.u32 1.1754944e-38, %v1239
          %v1241 = vsel %vm1238, %v1240, %v1236
          %v1242 = vmul.f32 %v1060, %v1241
          %v1243 = vrcp.pop %v1116
          %v1244 = vmul.f32 %v1116, %v1243
          %v1245 = vsub.f32 1.0, %v1244
          %v1246 = vmul.f32 %v1243, %v1245
          %v1247 = vadd.f32 %v1243, %v1246
          %vm1248 = vweird.f32 %v1116
          %vm1249 = vweird.f32 %v1243
          %vm1250 = vmor %vm1248, %vm1249
          %v1251 = vsel %vm1250, %v1243, %v1247
          %v1252 = vand.u32 2147483647, %v1116
          %vm1253 = vcmp.eq.f32.partialorder %v1252, 8.507059e+37
          %v1254 = vand.u32 %v1116, 2147483648
          %v1255 = vor.u32 1.1754944e-38, %v1254
          %v1256 = vsel %vm1253, %v1255, %v1251
          %v1257 = vmul.f32 %v1061, %v1256
          %v1258 = vrcp.pop %v1121
          %v1259 = vmul.f32 %v1121, %v1258
          %v1260 = vsub.f32 1.0, %v1259
          %v1261 = vmul.f32 %v1258, %v1260
          %v1262 = vadd.f32 %v1258, %v1261
          %vm1263 = vweird.f32 %v1121
          %vm1264 = vweird.f32 %v1258
          %vm1265 = vmor %vm1263, %vm1264
          %v1266 = vsel %vm1265, %v1258, %v1262
          %v1267 = vand.u32 2147483647, %v1121
          %vm1268 = vcmp.eq.f32.partialorder %v1267, 8.507059e+37
          %v1269 = vand.u32 %v1121, 2147483648
          %v1270 = vor.u32 1.1754944e-38, %v1269
          %v1271 = vsel %vm1268, %v1270, %v1266
          %v1272 = vmul.f32 %v1062, %v1271
          %v1273 = vrcp.pop %v1126
          %v1274 = vmul.f32 %v1126, %v1273
          %v1275 = vsub.f32 1.0, %v1274
          %v1276 = vmul.f32 %v1273, %v1275
          %v1277 = vadd.f32 %v1273, %v1276
          %vm1278 = vweird.f32 %v1126
          %vm1279 = vweird.f32 %v1273
          %vm1280 = vmor %vm1278, %vm1279
          %v1281 = vsel %vm1280, %v1273, %v1277
          %v1282 = vand.u32 2147483647, %v1126
          %vm1283 = vcmp.eq.f32.partialorder %v1282, 8.507059e+37
          %v1284 = vand.u32 %v1126, 2147483648
          %v1285 = vor.u32 1.1754944e-38, %v1284
          %v1286 = vsel %vm1283, %v1285, %v1281
          %v1287 = vmul.f32 %v1063, %v1286
          %v1288 = vrcp.pop %v1131
          %v1289 = vmul.f32 %v1131, %v1288
          %v1290 = vsub.f32 1.0, %v1289
          %v1291 = vmul.f32 %v1288, %v1290
          %v1292 = vadd.f32 %v1288, %v1291
          %vm1293 = vweird.f32 %v1131
          %vm1294 = vweird.f32 %v1288
          %vm1295 = vmor %vm1293, %vm1294
          %v1296 = vsel %vm1295, %v1288, %v1292
          %v1297 = vand.u32 2147483647, %v1131
          %vm1298 = vcmp.eq.f32.partialorder %v1297, 8.507059e+37
          %v1299 = vand.u32 %v1131, 2147483648
          %v1300 = vor.u32 1.1754944e-38, %v1299
          %v1301 = vsel %vm1298, %v1300, %v1296
          %v1302 = vmul.f32 %v1064, %v1301
          %v1303 = vrcp.pop %v1136
          %v1304 = vmul.f32 %v1136, %v1303
          %v1305 = vsub.f32 1.0, %v1304
          %v1306 = vmul.f32 %v1303, %v1305
          %v1307 = vadd.f32 %v1303, %v1306
          %vm1308 = vweird.f32 %v1136
          %vm1309 = vweird.f32 %v1303
          %vm1310 = vmor %vm1308, %vm1309
          %v1311 = vsel %vm1310, %v1303, %v1307
          %v1312 = vand.u32 2147483647, %v1136
          %vm1313 = vcmp.eq.f32.partialorder %v1312, 8.507059e+37
          %v1314 = vand.u32 %v1136, 2147483648
          %v1315 = vor.u32 1.1754944e-38, %v1314
          %v1316 = vsel %vm1313, %v1315, %v1311
          %v1317 = vmul.f32 %v1065, %v1316
          %v1318 = vrcp.pop %v1141
          %v1319 = vmul.f32 %v1141, %v1318
          %v1320 = vsub.f32 1.0, %v1319
          %v1321 = vmul.f32 %v1318, %v1320
          %v1322 = vadd.f32 %v1318, %v1321
          %vm1323 = vweird.f32 %v1141
          %vm1324 = vweird.f32 %v1318
          %vm1325 = vmor %vm1323, %vm1324
          %v1326 = vsel %vm1325, %v1318, %v1322
          %v1327 = vand.u32 2147483647, %v1141
          %vm1328 = vcmp.eq.f32.partialorder %v1327, 8.507059e+37
          %v1329 = vand.u32 %v1141, 2147483648
          %v1330 = vor.u32 1.1754944e-38, %v1329
          %v1331 = vsel %vm1328, %v1330, %v1326
          %v1332 = vmul.f32 %v1066, %v1331
          %v1333 = vrcp.pop %v1146
          %v1334 = vmul.f32 %v1146, %v1333
          %v1335 = vsub.f32 1.0, %v1334
          %v1336 = vmul.f32 %v1333, %v1335
          %v1337 = vadd.f32 %v1333, %v1336
          %vm1338 = vweird.f32 %v1146
          %vm1339 = vweird.f32 %v1333
          %vm1340 = vmor %vm1338, %vm1339
          %v1341 = vsel %vm1340, %v1333, %v1337
          %v1342 = vand.u32 2147483647, %v1146
          %vm1343 = vcmp.eq.f32.partialorder %v1342, 8.507059e+37
          %v1344 = vand.u32 %v1146, 2147483648
          %v1345 = vor.u32 1.1754944e-38, %v1344
          %v1346 = vsel %vm1343, %v1345, %v1341
          %v1347 = vmul.f32 %v1067, %v1346
          %v1348 = vrcp.pop %v1151
          %v1349 = vmul.f32 %v1151, %v1348
          %v1350 = vsub.f32 1.0, %v1349
          %v1351 = vmul.f32 %v1348, %v1350
          %v1352 = vadd.f32 %v1348, %v1351
          %vm1353 = vweird.f32 %v1151
          %vm1354 = vweird.f32 %v1348
          %vm1355 = vmor %vm1353, %vm1354
          %v1356 = vsel %vm1355, %v1348, %v1352
          %v1357 = vand.u32 2147483647, %v1151
          %vm1358 = vcmp.eq.f32.partialorder %v1357, 8.507059e+37
          %v1359 = vand.u32 %v1151, 2147483648
          %v1360 = vor.u32 1.1754944e-38, %v1359
          %v1361 = vsel %vm1358, %v1360, %v1356
          %v1362 = vmul.f32 %v1068, %v1361
          %v1363 = vrcp.pop %v1156
          %v1364 = vmul.f32 %v1156, %v1363
          %v1365 = vsub.f32 1.0, %v1364
          %v1366 = vmul.f32 %v1363, %v1365
          %v1367 = vadd.f32 %v1363, %v1366
          %vm1368 = vweird.f32 %v1156
          %vm1369 = vweird.f32 %v1363
          %vm1370 = vmor %vm1368, %vm1369
          %v1371 = vsel %vm1370, %v1363, %v1367
          %v1372 = vand.u32 2147483647, %v1156
          %vm1373 = vcmp.eq.f32.partialorder %v1372, 8.507059e+37
          %v1374 = vand.u32 %v1156, 2147483648
          %v1375 = vor.u32 1.1754944e-38, %v1374
          %v1376 = vsel %vm1373, %v1375, %v1371
          %v1377 = vmul.f32 %v1069, %v1376
          %v1378 = vrcp.pop %v1161
          %v1379 = vmul.f32 %v1161, %v1378
          %v1380 = vsub.f32 1.0, %v1379
          %v1381 = vmul.f32 %v1378, %v1380
          %v1382 = vadd.f32 %v1378, %v1381
          %vm1383 = vweird.f32 %v1161
          %vm1384 = vweird.f32 %v1378
          %vm1385 = vmor %vm1383, %vm1384
          %v1386 = vsel %vm1385, %v1378, %v1382
          %v1387 = vand.u32 2147483647, %v1161
          %vm1388 = vcmp.eq.f32.partialorder %v1387, 8.507059e+37
          %v1389 = vand.u32 %v1161, 2147483648
          %v1390 = vor.u32 1.1754944e-38, %v1389
          %v1391 = vsel %vm1388, %v1390, %v1386
          %v1392 = vmul.f32 %v1070, %v1391
          %v1393 = vrcp.pop %v1166
          %v1394 = vmul.f32 %v1166, %v1393
          %v1395 = vsub.f32 1.0, %v1394
          %v1396 = vmul.f32 %v1393, %v1395
          %v1397 = vadd.f32 %v1393, %v1396
          %vm1398 = vweird.f32 %v1166
          %vm1399 = vweird.f32 %v1393
          %vm1400 = vmor %vm1398, %vm1399
          %v1401 = vsel %vm1400, %v1393, %v1397
          %v1402 = vand.u32 2147483647, %v1166
          %vm1403 = vcmp.eq.f32.partialorder %v1402, 8.507059e+37
          %v1404 = vand.u32 %v1166, 2147483648
          %v1405 = vor.u32 1.1754944e-38, %v1404
          %v1406 = vsel %vm1403, %v1405, %v1401
          %v1407 = vmul.f32 %v1071, %v1406
          %1408 = vst [vmem:[%s304] sm:$0xff] %v1182
          %1409 = vst [vmem:[%s304 + $0x8] sm:$0xff] %v1197
          %1410 = vst [vmem:[%s304 + $0x10] sm:$0xff] %v1212
          %1411 = vst [vmem:[%s304 + $0x18] sm:$0xff] %v1227
          %1412 = vst [vmem:[%s304 + $0x20] sm:$0xff] %v1242
          %1413 = vst [vmem:[%s304 + $0x28] sm:$0xff] %v1257
          %1414 = vst [vmem:[%s304 + $0x30] sm:$0xff] %v1272
          %1415 = vst [vmem:[%s304 + $0x38] sm:$0xff] %v1287
          %1416 = vst [vmem:[%s304 + $0x40] sm:$0xff] %v1302
          %1417 = vst [vmem:[%s304 + $0x48] sm:$0xff] %v1317
          %1418 = vst [vmem:[%s304 + $0x50] sm:$0xff] %v1332
          %1419 = vst [vmem:[%s304 + $0x58] sm:$0xff] %v1347
          %1420 = vst [vmem:[%s304 + $0x60] sm:$0xff] %v1362
          %1421 = vst [vmem:[%s304 + $0x68] sm:$0xff] %v1377
          %1422 = vst [vmem:[%s304 + $0x70] sm:$0xff] %v1392
          %1423 = vst [vmem:[%s304 + $0x78] sm:$0xff] %v1407
        $region52: #{tpu_custom_call.1} parent=31 // pred_fallthru
          _
        %s1424 = sand.u32 %s136, 1
        %s1425 = scalar_lea.sflag [#allocation7], %s1424
        %s1426 = sand.u32 %s136, 1
        %s1427 = smul.addr %s1426, 128
        %s1428 = scalar_lea.vmem [#allocation11], %s1427
        // Predicated region
        $region53: #{tpu_custom_call.1} parent=31 // pred_check
          %p1429 = pneg %p146
        $region54: #{tpu_custom_call.1} parent=31 // pred_check_branch
          %1431 = sbr.rel (%p1429) target = $region56
        $region55: #{tpu_custom_call.1} parent=31 // pred_region
          %s1432 = smul.u32 16, %s29
          %1434 = vsyncadd %s1425, 0
          %s1435 = smul.addr %s28, 16
          %s1436 = sadd.s32 %s1432, %s1435
          %s1437 = smul.addr %s1436, 8
          %s1438 = scalar_lea.hbm %s3, %s1437
          %s1439 = sshll.u32 %s1428, 4
          %s1440 = int_to_ptr.vmem [resolvable:$true] %s1439
          %s1441 = sshll.u32 %s1438, 4
          %s1442 = int_to_ptr.hbm [resolvable:$true] %s1441
          %1447 = dma.vmem_to_hbm [thread:$0]  %s1440, 2048, %s1442, %s1425, 128, 128, 8
        $region56: #{tpu_custom_call.1} parent=31 // pred_fallthru
          _
      $region32: #{tpu_custom_call.1} parent=5 // pred_fallthru
        _
      %p1448 = scmp.le.s32.totalorder 2, %s18
      // Predicated region
      $region57: #{tpu_custom_call.1} parent=5 // pred_check
        %p1449 = pneg %p1448
      $region58: #{tpu_custom_call.1} parent=5 // pred_check_branch
        %1451 = sbr.rel (%p1449) target = $region60
      $region59: #{tpu_custom_call.1} parent=5 // pred_region
        %s1452 = ssub.s32 %s18, 2
        // Predicated region
        $region61: #{tpu_custom_call.1} parent=59 // pred_check
          %p1453 = pneg %p152
        $region62: #{tpu_custom_call.1} parent=59 // pred_check_branch
          %1455 = sbr.rel (%p1453) target = $region64
        $region63: #{tpu_custom_call.1} parent=59 // pred_region
          %s1456 = sand.u32 %s137, 1
          %s1457 = scalar_lea.sflag [#allocation7], %s1456
          %s1458 = sand.u32 %s137, 1
          %s1459 = smul.addr %s1458, 128
          %s1460 = scalar_lea.vmem [#allocation11], %s1459
          %1462 = dma.done %s1457, 2048
        $region64: #{tpu_custom_call.1} parent=59 // pred_fallthru
          _
      $region60: #{tpu_custom_call.1} parent=5 // pred_fallthru
        _
    $region6: #{tpu_custom_call.1} parent=1 // loop_footer
      %s22 = sadd.s32 1, %s18
    $region7: #{tpu_custom_call.1} parent=1 // loop_footer_branch
      %17 = sbr.rel target = $region3
    $region8: #{tpu_custom_call.1} parent=1 // loop_exit
      _
    %1463 = vsyncpa [#allocation6], 1
    %s1464 = scalar_lea.sflag [#allocation6], 1
    %1465 = vsyncpa %s1464, 1
    %1466 = vsyncpa [#allocation9], 1
    %s1467 = scalar_lea.sflag [#allocation9], 1
    %1468 = vsyncpa %s1467, 1
    %1469 = vsyncpa [#allocation7], 1
    %s1470 = scalar_lea.sflag [#allocation7], 1
    %1471 = vsyncpa %s1470, 1

</llo_original>
